<compile_context>
chip_gen: v5e
topology: v5e:2x2
jax: 0.10.0
libtpu: 0.0.40
codegen_flags: <defaults>
</compile_context>

<pallas_src>
import functools

import jax
import jax.numpy as jnp
import numpy as np
from jax.experimental import pallas as pl
from jax.experimental.pallas import tpu as pltpu

_CO = (16, 32, 64)   # conv output channels (fixed by the module)
_HID = 256           # predictor hidden width (fixed by the module)


def _pad8(n):
    return -(-n // 8) * 8


def _slab_layout(c_in, w, feat_dim):
    """Row layout (start, k_rows, n_cols) of the packed bf16 weight slab.

    Order: c1_dy0, c1_dy1, c2_dy0, c2_dy1, c3_dy0, c3_dy1, p2, p3.
    Shared (statically) by prepare_params and the forward wrapper.
    """
    widths = (w, w - 1, w - 2)
    cins = (c_in, _CO[0], _CO[1])
    entries, r = [], 0
    for wi, ci, co in zip(widths, cins, _CO):
        k_rows, n_cols = wi * ci, (wi - 1) * co
        for _dy in range(2):
            entries.append((r, k_rows, n_cols))
            r += _pad8(k_rows)
    entries.append((r, _HID, _HID)); r += _pad8(_HID)        # p2
    entries.append((r, _HID, feat_dim)); r += _pad8(_HID)    # p3
    n_cols_slab = max(e[2] for e in entries)
    return tuple(entries), r, n_cols_slab


# ---------------------------------------------------------------------------
# Fused kernel
# ---------------------------------------------------------------------------
def _rnd_fused_kernel(
    obs_ref,     # (Rp, W*C)  f32, rows=(b,y), lanes=x*C+c; pad rows are zero
    w_ref,       # (SR, SC)   bf16 packed weight slab (banded convs + p2 + p3)
    hw_ref,      # (h3*w3*64, 256+F) bf16 fused head weight [pred-L1 | target]
    b_ref,       # (6, NB)    f32 bias slab rows: c1, c2, c3, head, p2, p3
    out_ref,     # (B, 2F)    f32: [:, :F] predictor, [:, F:] target
    act1, act2, act3, feat,   # VMEM scratch (f32)
    *, B, H, W, F, lay,
):
    f32, bf16 = jnp.float32, jnp.bfloat16
    R = B * H                       # (b, y) rows actually computed
    Rp = act1.shape[0]
    h3, w3 = H - 3, W - 3
    nfl = w3 * _CO[2]               # valid lanes of one conv3 row
    e10, e11, e20, e21, e30, e31, ep2, ep3 = lay

    def wslab(e):
        r0, kr, nc = e
        return w_ref[r0:r0 + kr, 0:nc]

    # Pad rows feed only the dy=1 operand of (discarded) garbage output rows;
    # zero them once so everything stays finite.  feat's padded batch rows are
    # zeroed and sliced off before the output store.
    act1[R:, :] = jnp.zeros((Rp - R, act1.shape[1]), f32)
    act2[R:, :] = jnp.zeros((Rp - R, act2.shape[1]), f32)
    feat[...] = jnp.zeros_like(feat)

    def conv2x2(src_ref, dst_ref, e0, e1, bias_row):
        """2x2 valid conv = 2 banded lane-dense matmuls (dy = 0, 1).

        Rows stay on the (b, y) input grid; the dx taps live inside the banded
        weight, so there are NO per-row gather copies.
        """
        n = e0[2]
        a0 = src_ref[0:R, :].astype(bf16)
        a1 = src_ref[1:R + 1, :].astype(bf16)          # dy = 1 row shift
        acc = jnp.dot(a0, wslab(e0), preferred_element_type=f32)
        acc = acc + jnp.dot(a1, wslab(e1), preferred_element_type=f32)
        dst_ref[0:R, :] = jnp.maximum(
            acc + b_ref[bias_row:bias_row + 1, 0:n], 0.0)

    # ---------------- shared base CNN (used by BOTH heads) ----------------
    conv2x2(obs_ref, act1, e10, e11, 0)
    conv2x2(act1, act2, e20, e21, 1)
    conv2x2(act2, act3, e30, e31, 2)

    # ----- flatten: 8 lane-aligned row copies into a (Mp, h3*w3*64) slab ---
    # (torch Flatten's (c, y, x) order is absorbed into hw's row permutation)
    for b in range(B):
        for y in range(h3):
            feat[b:b + 1, y * nfl:(y + 1) * nfl] = (
                act3[b * H + y:b * H + y + 1, 0:nfl])

    # ------ fused heads: ONE K = h3*w3*64 matmul shared by both heads ------
    nh = _HID + F
    yh = jnp.dot(feat[...].astype(bf16), hw_ref[...],
                 preferred_element_type=f32) + b_ref[3:4, 0:nh]
    th = yh[:, _HID:]                        # target head: no activation
    ph = jnp.maximum(yh[:, :_HID], 0.0)      # predictor L1 + ReLU
    ph = jnp.maximum(
        jnp.dot(ph.astype(bf16), wslab(ep2), preferred_element_type=f32)
        + b_ref[4:5, 0:_HID], 0.0)
    ph = (jnp.dot(ph.astype(bf16), wslab(ep3), preferred_element_type=f32)
          + b_ref[5:6, 0:F])

    out_ref[:, 0:F] = ph[0:B, :]
    out_ref[:, F:2 * F] = th[0:B, :]


# ---------------------------------------------------------------------------
# Parameters: synthetic torch-layout init + one-time repack to kernel layout
# ---------------------------------------------------------------------------
def init_params(key, c_in, h, w, output_features=256):
    """Synthetic stand-in for layer_init_std_bias, in PyTorch native layouts."""
    n_flatten = 64 * (h - 3) * (w - 3)

    def dense(k, shape, scale):
        return scale * jax.random.normal(k, shape, dtype=jnp.float32)

    ks = jax.random.split(key, 8)
    p = {}
    p["c1_w"] = dense(ks[0], (16, c_in, 2, 2), 0.2)
    p["c1_b"] = jnp.zeros((16,), jnp.float32)
    p["c2_w"] = dense(ks[1], (32, 16, 2, 2), 0.1)
    p["c2_b"] = jnp.zeros((32,), jnp.float32)
    p["c3_w"] = dense(ks[2], (64, 32, 2, 2), 0.1)
    p["c3_b"] = jnp.zeros((64,), jnp.float32)
    p["p1_w"] = dense(ks[3], (n_flatten, 256), 0.05)
    p["p1_b"] = jnp.zeros((256,), jnp.float32)
    p["p2_w"] = dense(ks[4], (256, 256), 0.05)
    p["p2_b"] = jnp.zeros((256,), jnp.float32)
    p["p3_w"] = dense(ks[5], (256, output_features), 0.05)
    p["p3_b"] = jnp.zeros((output_features,), jnp.float32)
    p["t1_w"] = dense(ks[6], (n_flatten, output_features), 0.05)
    p["t1_b"] = jnp.zeros((output_features,), jnp.float32)
    return p


def prepare_params(p, c_in, h, w):
    """One-time repack (outside jit) of torch-layout params into kernel layout."""
    F = p["p3_w"].shape[1]
    h3, w3 = h - 3, w - 3
    cf = _CO[2]
    lay, n_rows, n_cols = _slab_layout(c_in, w, F)

    def band(wt, wi, dy):
        """(Co, Cin, 2, 2) torch conv weight -> banded (wi*Cin, (wi-1)*Co)."""
        wt = np.asarray(wt, np.float32)
        co, ci = wt.shape[0], wt.shape[1]
        wo = wi - 1
        m = np.zeros((wi * ci, wo * co), np.float32)
        for dx in range(2):
            blk = wt[:, :, dy, dx].T                       # (Cin, Co)
            for xo in range(wo):
                xi = xo + dx
                m[xi * ci:(xi + 1) * ci, xo * co:(xo + 1) * co] = blk
        return m

    mats = [band(p["c1_w"], w, 0), band(p["c1_w"], w, 1),
            band(p["c2_w"], w - 1, 0), band(p["c2_w"], w - 1, 1),
            band(p["c3_w"], w - 2, 0), band(p["c3_w"], w - 2, 1),
            np.asarray(p["p2_w"], np.float32),
            np.asarray(p["p3_w"], np.float32)]
    slab = np.zeros((n_rows, n_cols), np.float32)
    for (r0, kr, nc), m in zip(lay, mats):
        assert m.shape == (kr, nc), (m.shape, (kr, nc))
        slab[r0:r0 + kr, :nc] = m

    # fused head weight [predictor-L1 | target]; rows permuted from torch
    # Flatten order (c, y, x) to the kernel's feat lane order (y, x, c)
    wc = np.concatenate([np.asarray(p["p1_w"], np.float32),
                         np.asarray(p["t1_w"], np.float32)], axis=1)
    hw = (wc.reshape(cf, h3, w3, _HID + F)
            .transpose(1, 2, 0, 3).reshape(h3 * w3 * cf, _HID + F))

    # bias slab: one f32 row per layer; conv biases pre-tiled over x lanes
    nb = max((w - 1) * _CO[0], (w - 2) * _CO[1], (w - 3) * _CO[2],
             _HID + F, _HID, F)
    bs = np.zeros((6, nb), np.float32)
    bs[0, :(w - 1) * _CO[0]] = np.tile(np.asarray(p["c1_b"]), w - 1)
    bs[1, :(w - 2) * _CO[1]] = np.tile(np.asarray(p["c2_b"]), w - 2)
    bs[2, :(w - 3) * _CO[2]] = np.tile(np.asarray(p["c3_b"]), w - 3)
    bs[3, :_HID + F] = np.concatenate([np.asarray(p["p1_b"]),
                                       np.asarray(p["t1_b"])])
    bs[4, :_HID] = np.asarray(p["p2_b"])
    bs[5, :F] = np.asarray(p["p3_b"])

    return {"w": jnp.asarray(slab, dtype=jnp.bfloat16),
            "hw": jnp.asarray(hw, dtype=jnp.bfloat16),
            "b": jnp.asarray(bs, dtype=jnp.float32)}


# ---------------------------------------------------------------------------
# Forward: one XLA transpose/reshape/pad, then ONE Pallas kernel
# ---------------------------------------------------------------------------
def rnd_minigrid_forward(kp, next_obs):
    B, C, H, W = next_obs.shape
    F = kp["hw"].shape[1] - _HID
    lay, _, _ = _slab_layout(C, W, F)

    R = B * H
    Rp = max(8, _pad8(R + 1))            # +1 pad row for the dy=1 shift read
    Mp = max(8, _pad8(B))                # MLP rows padded to a sublane multiple

    obs2d = (jnp.transpose(next_obs, (0, 2, 3, 1))
             .reshape(R, W * C).astype(jnp.float32))
    obs2d = jnp.pad(obs2d, ((0, Rp - R), (0, 0)))

    vmem = pl.BlockSpec(memory_space=pltpu.MemorySpace.VMEM)
    kernel = functools.partial(_rnd_fused_kernel, B=B, H=H, W=W, F=F, lay=lay)

    out = pl.pallas_call(
        kernel,
        out_shape=jax.ShapeDtypeStruct((B, 2 * F), jnp.float32),
        in_specs=[vmem] * 4,
        out_specs=vmem,
        scratch_shapes=[
            pltpu.VMEM((Rp, (W - 1) * _CO[0]), jnp.float32),            # act1
            pltpu.VMEM((Rp, (W - 2) * _CO[1]), jnp.float32),            # act2
            pltpu.VMEM((Rp, (W - 3) * _CO[2]), jnp.float32),            # act3
            pltpu.VMEM((Mp, (H - 3) * (W - 3) * _CO[2]), jnp.float32),  # feat
        ],
    )(obs2d, kp["w"], kp["hw"], kp["b"])
    return out[:, :F], out[:, F:]


# ---------------------------------------------------------------------------
# Plain-JAX reference (same bf16 weight/activation rounding) for validation
# ---------------------------------------------------------------------------
def reference_forward(p, obs):
    bf = lambda a: a.astype(jnp.bfloat16)
    x = jnp.transpose(obs, (0, 2, 3, 1)).astype(jnp.float32)      # NHWC

    def conv(x, w, b):
        y = jax.lax.conv_general_dilated(
            bf(x), bf(jnp.transpose(w, (2, 3, 1, 0))),            # HWIO
            window_strides=(1, 1), padding="VALID",
            dimension_numbers=("NHWC", "HWIO", "NHWC"),
            preferred_element_type=jnp.float32)
        return jnp.maximum(y + b, 0.0)

    x = conv(x, p["c1_w"], p["c1_b"])
    x = conv(x, p["c2_w"], p["c2_b"])
    x = conv(x, p["c3_w"], p["c3_b"])
    feat = jnp.transpose(x, (0, 3, 1, 2)).reshape(x.shape[0], -1)  # torch Flatten

    def lin(v, w, b, relu):
        y = jnp.dot(bf(v), bf(w), preferred_element_type=jnp.float32) + b
        return jnp.maximum(y, 0.0) if relu else y

    pf = lin(feat, p["p1_w"], p["p1_b"], True)
    pf = lin(pf, p["p2_w"], p["p2_b"], True)
    pf = lin(pf, p["p3_w"], p["p3_b"], False)
    tf = lin(feat, p["t1_w"], p["t1_b"], False)
    return pf, tf


if __name__ == "__main__":
    key = jax.random.PRNGKey(0)
    k_obs, k_param = jax.random.split(key)

    # MiniGrid-like observation: batch=2, channels=4, 7x7 grid (NCHW)
    B, C, H, W = 2, 4, 7, 7
    next_obs = jax.random.normal(k_obs, (B, C, H, W), dtype=jnp.float32)

    params = init_params(k_param, C, H, W, output_features=256)
    kparams = prepare_params(params, C, H, W)      # one-time repack

    fwd = jax.jit(rnd_minigrid_forward)
    predict_feature, target_feature = fwd(kparams, next_obs)
    jax.block_until_ready((predict_feature, target_feature))

    assert predict_feature.shape == (B, 256)
    assert target_feature.shape == (B, 256)

    # correctness check against a plain-JAX reference (same bf16 rounding)
    ref_p, ref_t = reference_forward(params, next_obs)
    err_p = float(jnp.max(jnp.abs(predict_feature - ref_p)))
    err_t = float(jnp.max(jnp.abs(target_feature - ref_t)))
    assert err_p < 1e-2 and err_t < 1e-2, (err_p, err_t)

    print("KERNEL_OK")
</pallas_src>

<mosaic_0001>
module attributes {stable_mosaic.version = 11 : i64} {
  func.func @_rnd_fused_kernel(%arg0: memref<16x28xf32, #tpu.memory_space<vmem>>, %arg1: memref<1088x256xbf16, #tpu.memory_space<vmem>>, %arg2: memref<1024x512xbf16, #tpu.memory_space<vmem>>, %arg3: memref<6x512xf32, #tpu.memory_space<vmem>>, %arg4: memref<2x512xf32, #tpu.memory_space<vmem>>, %arg5: memref<16x96xf32, #tpu.memory_space<vmem>>, %arg6: memref<16x160xf32, #tpu.memory_space<vmem>>, %arg7: memref<16x256xf32, #tpu.memory_space<vmem>>, %arg8: memref<8x1024xf32, #tpu.memory_space<vmem>>) attributes {dimension_semantics = [], scalar_prefetch = 0 : i64, scratch_operands = 4 : i64, tpu.core_type = #tpu.core_type<tc>} {
    %cst = arith.constant 0.000000e+00 : f32
    %0 = vector.broadcast %cst : f32 to vector<2x96xf32>
    %c14 = arith.constant 14 : index
    %c0 = arith.constant 0 : index
    %1 = vector.load %arg5[%c14, %c0] : memref<16x96xf32, #tpu.memory_space<vmem>>, vector<2x96xf32>
    tpu.vector_store %arg5[%c14, %c0], %0 {strides = array<i32>} : memref<16x96xf32, #tpu.memory_space<vmem>>, vector<2x96xf32>,
    %cst_0 = arith.constant 0.000000e+00 : f32
    %2 = vector.broadcast %cst_0 : f32 to vector<2x160xf32>
    %c14_1 = arith.constant 14 : index
    %c0_2 = arith.constant 0 : index
    %3 = vector.load %arg6[%c14_1, %c0_2] : memref<16x160xf32, #tpu.memory_space<vmem>>, vector<2x160xf32>
    tpu.vector_store %arg6[%c14_1, %c0_2], %2 {strides = array<i32>} : memref<16x160xf32, #tpu.memory_space<vmem>>, vector<2x160xf32>,
    %cst_3 = arith.constant 0.000000e+00 : f32
    %4 = vector.broadcast %cst_3 : f32 to vector<8x1024xf32>
    %c0_4 = arith.constant 0 : index
    %c0_5 = arith.constant 0 : index
    %5 = vector.load %arg8[%c0_4, %c0_5] : memref<8x1024xf32, #tpu.memory_space<vmem>>, vector<8x1024xf32>
    tpu.vector_store %arg8[%c0_4, %c0_5], %4 {strides = array<i32>} : memref<8x1024xf32, #tpu.memory_space<vmem>>, vector<8x1024xf32>,
    %c0_6 = arith.constant 0 : index
    %c0_7 = arith.constant 0 : index
    %6 = vector.load %arg0[%c0_6, %c0_7] : memref<16x28xf32, #tpu.memory_space<vmem>>, vector<14x28xf32>
    %7 = arith.truncf %6 : vector<14x28xf32> to vector<14x28xbf16>
    %c1 = arith.constant 1 : index
    %c0_8 = arith.constant 0 : index
    %8 = vector.load %arg0[%c1, %c0_8] : memref<16x28xf32, #tpu.memory_space<vmem>>, vector<14x28xf32>
    %9 = arith.truncf %8 : vector<14x28xf32> to vector<14x28xbf16>
    %c0_9 = arith.constant 0 : index
    %c0_10 = arith.constant 0 : index
    %10 = vector.load %arg1[%c0_9, %c0_10] : memref<1088x256xbf16, #tpu.memory_space<vmem>>, vector<28x96xbf16>
    %cst_11 = arith.constant dense<0.000000e+00> : vector<14x96xf32>
    %11 = tpu.matmul %7, %10, %cst_11 {dimension_numbers = #tpu.dot_dimension_numbers<[1], [0], [0], [1], [0, 0, 1, 1], [], []>} : vector<14x28xbf16>, vector<28x96xbf16>, vector<14x96xf32> -> vector<14x96xf32>
    %c32 = arith.constant 32 : index
    %c0_12 = arith.constant 0 : index
    %12 = vector.load %arg1[%c32, %c0_12] : memref<1088x256xbf16, #tpu.memory_space<vmem>>, vector<28x96xbf16>
    %cst_13 = arith.constant dense<0.000000e+00> : vector<14x96xf32>
    %13 = tpu.matmul %9, %12, %cst_13 {dimension_numbers = #tpu.dot_dimension_numbers<[1], [0], [0], [1], [0, 0, 1, 1], [], []>} : vector<14x28xbf16>, vector<28x96xbf16>, vector<14x96xf32> -> vector<14x96xf32>
    %14 = arith.addf %11, %13 : vector<14x96xf32>
    %c0_14 = arith.constant 0 : index
    %c0_15 = arith.constant 0 : index
    %15 = vector.load %arg3[%c0_14, %c0_15] : memref<6x512xf32, #tpu.memory_space<vmem>>, vector<1x96xf32>
    %16 = vector.broadcast %15 : vector<1x96xf32> to vector<14x96xf32>
    %17 = arith.addf %14, %16 : vector<14x96xf32>
    %cst_16 = arith.constant 0.000000e+00 : f32
    %18 = vector.broadcast %cst_16 : f32 to vector<14x96xf32>
    %19 = arith.maximumf %17, %18 : vector<14x96xf32>
    %c0_17 = arith.constant 0 : index
    %c0_18 = arith.constant 0 : index
    %20 = vector.load %arg5[%c0_17, %c0_18] : memref<16x96xf32, #tpu.memory_space<vmem>>, vector<14x96xf32>
    tpu.vector_store %arg5[%c0_17, %c0_18], %19 {strides = array<i32>} : memref<16x96xf32, #tpu.memory_space<vmem>>, vector<14x96xf32>,
    %c0_19 = arith.constant 0 : index
    %c0_20 = arith.constant 0 : index
    %21 = vector.load %arg5[%c0_19, %c0_20] : memref<16x96xf32, #tpu.memory_space<vmem>>, vector<14x96xf32>
    %22 = arith.truncf %21 : vector<14x96xf32> to vector<14x96xbf16>
    %c1_21 = arith.constant 1 : index
    %c0_22 = arith.constant 0 : index
    %23 = vector.load %arg5[%c1_21, %c0_22] : memref<16x96xf32, #tpu.memory_space<vmem>>, vector<14x96xf32>
    %24 = arith.truncf %23 : vector<14x96xf32> to vector<14x96xbf16>
    %c64 = arith.constant 64 : index
    %c0_23 = arith.constant 0 : index
    %25 = vector.load %arg1[%c64, %c0_23] : memref<1088x256xbf16, #tpu.memory_space<vmem>>, vector<96x160xbf16>
    %cst_24 = arith.constant dense<0.000000e+00> : vector<14x160xf32>
    %26 = tpu.matmul %22, %25, %cst_24 {dimension_numbers = #tpu.dot_dimension_numbers<[1], [0], [0], [1], [0, 0, 1, 1], [], []>} : vector<14x96xbf16>, vector<96x160xbf16>, vector<14x160xf32> -> vector<14x160xf32>
    %c160 = arith.constant 160 : index
    %c0_25 = arith.constant 0 : index
    %27 = vector.load %arg1[%c160, %c0_25] : memref<1088x256xbf16, #tpu.memory_space<vmem>>, vector<96x160xbf16>
    %cst_26 = arith.constant dense<0.000000e+00> : vector<14x160xf32>
    %28 = tpu.matmul %24, %27, %cst_26 {dimension_numbers = #tpu.dot_dimension_numbers<[1], [0], [0], [1], [0, 0, 1, 1], [], []>} : vector<14x96xbf16>, vector<96x160xbf16>, vector<14x160xf32> -> vector<14x160xf32>
    %29 = arith.addf %26, %28 : vector<14x160xf32>
    %c1_27 = arith.constant 1 : index
    %c0_28 = arith.constant 0 : index
    %30 = vector.load %arg3[%c1_27, %c0_28] : memref<6x512xf32, #tpu.memory_space<vmem>>, vector<1x160xf32>
    %31 = vector.broadcast %30 : vector<1x160xf32> to vector<14x160xf32>
    %32 = arith.addf %29, %31 : vector<14x160xf32>
    %cst_29 = arith.constant 0.000000e+00 : f32
    %33 = vector.broadcast %cst_29 : f32 to vector<14x160xf32>
    %34 = arith.maximumf %32, %33 : vector<14x160xf32>
    %c0_30 = arith.constant 0 : index
    %c0_31 = arith.constant 0 : index
    %35 = vector.load %arg6[%c0_30, %c0_31] : memref<16x160xf32, #tpu.memory_space<vmem>>, vector<14x160xf32>
    tpu.vector_store %arg6[%c0_30, %c0_31], %34 {strides = array<i32>} : memref<16x160xf32, #tpu.memory_space<vmem>>, vector<14x160xf32>,
    %c0_32 = arith.constant 0 : index
    %c0_33 = arith.constant 0 : index
    %36 = vector.load %arg6[%c0_32, %c0_33] : memref<16x160xf32, #tpu.memory_space<vmem>>, vector<14x160xf32>
    %37 = arith.truncf %36 : vector<14x160xf32> to vector<14x160xbf16>
    %c1_34 = arith.constant 1 : index
    %c0_35 = arith.constant 0 : index
    %38 = vector.load %arg6[%c1_34, %c0_35] : memref<16x160xf32, #tpu.memory_space<vmem>>, vector<14x160xf32>
    %39 = arith.truncf %38 : vector<14x160xf32> to vector<14x160xbf16>
    %c256 = arith.constant 256 : index
    %c0_36 = arith.constant 0 : index
    %40 = vector.load %arg1[%c256, %c0_36] : memref<1088x256xbf16, #tpu.memory_space<vmem>>, vector<160x256xbf16>
    %cst_37 = arith.constant dense<0.000000e+00> : vector<14x256xf32>
    %41 = tpu.matmul %37, %40, %cst_37 {dimension_numbers = #tpu.dot_dimension_numbers<[1], [0], [0], [1], [0, 0, 1, 1], [], []>} : vector<14x160xbf16>, vector<160x256xbf16>, vector<14x256xf32> -> vector<14x256xf32>
    %c416 = arith.constant 416 : index
    %c0_38 = arith.constant 0 : index
    %42 = vector.load %arg1[%c416, %c0_38] : memref<1088x256xbf16, #tpu.memory_space<vmem>>, vector<160x256xbf16>
    %cst_39 = arith.constant dense<0.000000e+00> : vector<14x256xf32>
    %43 = tpu.matmul %39, %42, %cst_39 {dimension_numbers = #tpu.dot_dimension_numbers<[1], [0], [0], [1], [0, 0, 1, 1], [], []>} : vector<14x160xbf16>, vector<160x256xbf16>, vector<14x256xf32> -> vector<14x256xf32>
    %44 = arith.addf %41, %43 : vector<14x256xf32>
    %c2 = arith.constant 2 : index
    %c0_40 = arith.constant 0 : index
    %45 = vector.load %arg3[%c2, %c0_40] : memref<6x512xf32, #tpu.memory_space<vmem>>, vector<1x256xf32>
    %46 = vector.broadcast %45 : vector<1x256xf32> to vector<14x256xf32>
    %47 = arith.addf %44, %46 : vector<14x256xf32>
    %cst_41 = arith.constant 0.000000e+00 : f32
    %48 = vector.broadcast %cst_41 : f32 to vector<14x256xf32>
    %49 = arith.maximumf %47, %48 : vector<14x256xf32>
    %c0_42 = arith.constant 0 : index
    %c0_43 = arith.constant 0 : index
    %50 = vector.load %arg7[%c0_42, %c0_43] : memref<16x256xf32, #tpu.memory_space<vmem>>, vector<14x256xf32>
    tpu.vector_store %arg7[%c0_42, %c0_43], %49 {strides = array<i32>} : memref<16x256xf32, #tpu.memory_space<vmem>>, vector<14x256xf32>,
    %c0_44 = arith.constant 0 : index
    %c0_45 = arith.constant 0 : index
    %51 = vector.load %arg7[%c0_44, %c0_45] : memref<16x256xf32, #tpu.memory_space<vmem>>, vector<1x256xf32>
    %c0_46 = arith.constant 0 : index
    %c0_47 = arith.constant 0 : index
    %52 = vector.load %arg8[%c0_46, %c0_47] : memref<8x1024xf32, #tpu.memory_space<vmem>>, vector<1x256xf32>
    tpu.vector_store %arg8[%c0_46, %c0_47], %51 {strides = array<i32>} : memref<8x1024xf32, #tpu.memory_space<vmem>>, vector<1x256xf32>,
    %c1_48 = arith.constant 1 : index
    %c0_49 = arith.constant 0 : index
    %53 = vector.load %arg7[%c1_48, %c0_49] : memref<16x256xf32, #tpu.memory_space<vmem>>, vector<1x256xf32>
    %c0_50 = arith.constant 0 : index
    %c256_51 = arith.constant 256 : index
    %54 = vector.load %arg8[%c0_50, %c256_51] : memref<8x1024xf32, #tpu.memory_space<vmem>>, vector<1x256xf32>
    tpu.vector_store %arg8[%c0_50, %c256_51], %53 {strides = array<i32>} : memref<8x1024xf32, #tpu.memory_space<vmem>>, vector<1x256xf32>,
    %c2_52 = arith.constant 2 : index
    %c0_53 = arith.constant 0 : index
    %55 = vector.load %arg7[%c2_52, %c0_53] : memref<16x256xf32, #tpu.memory_space<vmem>>, vector<1x256xf32>
    %c0_54 = arith.constant 0 : index
    %c512 = arith.constant 512 : index
    %56 = vector.load %arg8[%c0_54, %c512] : memref<8x1024xf32, #tpu.memory_space<vmem>>, vector<1x256xf32>
    tpu.vector_store %arg8[%c0_54, %c512], %55 {strides = array<i32>} : memref<8x1024xf32, #tpu.memory_space<vmem>>, vector<1x256xf32>,
    %c3 = arith.constant 3 : index
    %c0_55 = arith.constant 0 : index
    %57 = vector.load %arg7[%c3, %c0_55] : memref<16x256xf32, #tpu.memory_space<vmem>>, vector<1x256xf32>
    %c0_56 = arith.constant 0 : index
    %c768 = arith.constant 768 : index
    %58 = vector.load %arg8[%c0_56, %c768] : memref<8x1024xf32, #tpu.memory_space<vmem>>, vector<1x256xf32>
    tpu.vector_store %arg8[%c0_56, %c768], %57 {strides = array<i32>} : memref<8x1024xf32, #tpu.memory_space<vmem>>, vector<1x256xf32>,
    %c7 = arith.constant 7 : index
    %c0_57 = arith.constant 0 : index
    %59 = vector.load %arg7[%c7, %c0_57] : memref<16x256xf32, #tpu.memory_space<vmem>>, vector<1x256xf32>
    %c1_58 = arith.constant 1 : index
    %c0_59 = arith.constant 0 : index
    %60 = vector.load %arg8[%c1_58, %c0_59] : memref<8x1024xf32, #tpu.memory_space<vmem>>, vector<1x256xf32>
    tpu.vector_store %arg8[%c1_58, %c0_59], %59 {strides = array<i32>} : memref<8x1024xf32, #tpu.memory_space<vmem>>, vector<1x256xf32>,
    %c8 = arith.constant 8 : index
    %c0_60 = arith.constant 0 : index
    %61 = vector.load %arg7[%c8, %c0_60] : memref<16x256xf32, #tpu.memory_space<vmem>>, vector<1x256xf32>
    %c1_61 = arith.constant 1 : index
    %c256_62 = arith.constant 256 : index
    %62 = vector.load %arg8[%c1_61, %c256_62] : memref<8x1024xf32, #tpu.memory_space<vmem>>, vector<1x256xf32>
    tpu.vector_store %arg8[%c1_61, %c256_62], %61 {strides = array<i32>} : memref<8x1024xf32, #tpu.memory_space<vmem>>, vector<1x256xf32>,
    %c9 = arith.constant 9 : index
    %c0_63 = arith.constant 0 : index
    %63 = vector.load %arg7[%c9, %c0_63] : memref<16x256xf32, #tpu.memory_space<vmem>>, vector<1x256xf32>
    %c1_64 = arith.constant 1 : index
    %c512_65 = arith.constant 512 : index
    %64 = vector.load %arg8[%c1_64, %c512_65] : memref<8x1024xf32, #tpu.memory_space<vmem>>, vector<1x256xf32>
    tpu.vector_store %arg8[%c1_64, %c512_65], %63 {strides = array<i32>} : memref<8x1024xf32, #tpu.memory_space<vmem>>, vector<1x256xf32>,
    %c10 = arith.constant 10 : index
    %c0_66 = arith.constant 0 : index
    %65 = vector.load %arg7[%c10, %c0_66] : memref<16x256xf32, #tpu.memory_space<vmem>>, vector<1x256xf32>
    %c1_67 = arith.constant 1 : index
    %c768_68 = arith.constant 768 : index
    %66 = vector.load %arg8[%c1_67, %c768_68] : memref<8x1024xf32, #tpu.memory_space<vmem>>, vector<1x256xf32>
    tpu.vector_store %arg8[%c1_67, %c768_68], %65 {strides = array<i32>} : memref<8x1024xf32, #tpu.memory_space<vmem>>, vector<1x256xf32>,
    %c0_69 = arith.constant 0 : index
    %c0_70 = arith.constant 0 : index
    %67 = vector.load %arg8[%c0_69, %c0_70] : memref<8x1024xf32, #tpu.memory_space<vmem>>, vector<8x1024xf32>
    %68 = arith.truncf %67 : vector<8x1024xf32> to vector<8x1024xbf16>
    %c0_71 = arith.constant 0 : index
    %c0_72 = arith.constant 0 : index
    %69 = vector.load %arg2[%c0_71, %c0_72] : memref<1024x512xbf16, #tpu.memory_space<vmem>>, vector<1024x512xbf16>
    %cst_73 = arith.constant dense<0.000000e+00> : vector<8x512xf32>
    %70 = tpu.matmul %68, %69, %cst_73 {dimension_numbers = #tpu.dot_dimension_numbers<[1], [0], [0], [1], [0, 0, 1, 1], [], []>} : vector<8x1024xbf16>, vector<1024x512xbf16>, vector<8x512xf32> -> vector<8x512xf32>
    %c3_74 = arith.constant 3 : index
    %c0_75 = arith.constant 0 : index
    %71 = vector.load %arg3[%c3_74, %c0_75] : memref<6x512xf32, #tpu.memory_space<vmem>>, vector<1x512xf32>
    %72 = vector.broadcast %71 : vector<1x512xf32> to vector<8x512xf32>
    %73 = arith.addf %70, %72 : vector<8x512xf32>
    %74 = vector.extract_strided_slice %73 {offsets = [0, 256], sizes = [8, 256], strides = [1, 1]} : vector<8x512xf32> to vector<8x256xf32>
    %75 = vector.extract_strided_slice %73 {offsets = [0, 0], sizes = [8, 256], strides = [1, 1]} : vector<8x512xf32> to vector<8x256xf32>
    %cst_76 = arith.constant 0.000000e+00 : f32
    %76 = vector.broadcast %cst_76 : f32 to vector<8x256xf32>
    %77 = arith.maximumf %75, %76 : vector<8x256xf32>
    %78 = arith.truncf %77 : vector<8x256xf32> to vector<8x256xbf16>
    %c576 = arith.constant 576 : index
    %c0_77 = arith.constant 0 : index
    %79 = vector.load %arg1[%c576, %c0_77] : memref<1088x256xbf16, #tpu.memory_space<vmem>>, vector<256x256xbf16>
    %cst_78 = arith.constant dense<0.000000e+00> : vector<8x256xf32>
    %80 = tpu.matmul %78, %79, %cst_78 {dimension_numbers = #tpu.dot_dimension_numbers<[1], [0], [0], [1], [0, 0, 1, 1], [], []>} : vector<8x256xbf16>, vector<256x256xbf16>, vector<8x256xf32> -> vector<8x256xf32>
    %c4 = arith.constant 4 : index
    %c0_79 = arith.constant 0 : index
    %81 = vector.load %arg3[%c4, %c0_79] : memref<6x512xf32, #tpu.memory_space<vmem>>, vector<1x256xf32>
    %82 = vector.broadcast %81 : vector<1x256xf32> to vector<8x256xf32>
    %83 = arith.addf %80, %82 : vector<8x256xf32>
    %cst_80 = arith.constant 0.000000e+00 : f32
    %84 = vector.broadcast %cst_80 : f32 to vector<8x256xf32>
    %85 = arith.maximumf %83, %84 : vector<8x256xf32>
    %86 = arith.truncf %85 : vector<8x256xf32> to vector<8x256xbf16>
    %c832 = arith.constant 832 : index
    %c0_81 = arith.constant 0 : index
    %87 = vector.load %arg1[%c832, %c0_81] : memref<1088x256xbf16, #tpu.memory_space<vmem>>, vector<256x256xbf16>
    %cst_82 = arith.constant dense<0.000000e+00> : vector<8x256xf32>
    %88 = tpu.matmul %86, %87, %cst_82 {dimension_numbers = #tpu.dot_dimension_numbers<[1], [0], [0], [1], [0, 0, 1, 1], [], []>} : vector<8x256xbf16>, vector<256x256xbf16>, vector<8x256xf32> -> vector<8x256xf32>
    %c5 = arith.constant 5 : index
    %c0_83 = arith.constant 0 : index
    %89 = vector.load %arg3[%c5, %c0_83] : memref<6x512xf32, #tpu.memory_space<vmem>>, vector<1x256xf32>
    %90 = vector.broadcast %89 : vector<1x256xf32> to vector<8x256xf32>
    %91 = arith.addf %88, %90 : vector<8x256xf32>
    %92 = vector.extract_strided_slice %91 {offsets = [0, 0], sizes = [2, 256], strides = [1, 1]} : vector<8x256xf32> to vector<2x256xf32>
    %c0_84 = arith.constant 0 : index
    %c0_85 = arith.constant 0 : index
    %93 = vector.load %arg4[%c0_84, %c0_85] : memref<2x512xf32, #tpu.memory_space<vmem>>, vector<2x256xf32>
    tpu.vector_store %arg4[%c0_84, %c0_85], %92 {strides = array<i32>} : memref<2x512xf32, #tpu.memory_space<vmem>>, vector<2x256xf32>,
    %94 = vector.extract_strided_slice %74 {offsets = [0, 0], sizes = [2, 256], strides = [1, 1]} : vector<8x256xf32> to vector<2x256xf32>
    %c0_86 = arith.constant 0 : index
    %c256_87 = arith.constant 256 : index
    %95 = vector.load %arg4[%c0_86, %c256_87] : memref<2x512xf32, #tpu.memory_space<vmem>>, vector<2x256xf32>
    tpu.vector_store %arg4[%c0_86, %c256_87], %94 {strides = array<i32>} : memref<2x512xf32, #tpu.memory_space<vmem>>, vector<2x256xf32>,
    return
  }
}

</mosaic_0001>

<llo_original>
// kernel: rnd_minigrid_forward.1
$region0: #{rnd_minigrid_forward.1}
  #allocation0 [shape = 'u32[]', space=smem, size = 0x4, offset = 0x4, fixed_abs, tag = 'smem constant byte address 0x4 - core index']
  #allocation1 [shape = 'u32[72,128]{1,0:T(1,128)}', space=vmem, size = 0x9000, scoped, tag = 'internal scratch']
  #allocation2 [shape = 'f32[16,96]{1,0:T(8,128)}', space=vmem, size = 0x2000, scoped, tag = 'scratch operand']
  #allocation3 [shape = 'f32[16,160]{1,0:T(8,128)}', space=vmem, size = 0x4000, scoped, tag = 'scratch operand']
  #allocation4 [shape = 'f32[16,256]{1,0:T(8,128)}', space=vmem, size = 0x4000, scoped, tag = 'scratch operand']
  #allocation5 [shape = 'f32[8,1024]{1,0:T(8,128)}', space=vmem, size = 0x8000, scoped, tag = 'scratch operand']
  %s0 = inlined_call_operand.vmem [shape: f32[16,28], index: 0, kind: input, shape index: {}]
  %s1 = inlined_call_operand.hbm [shape: bf16[1088,256], index: 1, kind: input, shape index: {}]
  %s2 = inlined_call_operand.hbm [shape: bf16[1024,512], index: 2, kind: input, shape index: {}]
  %s3 = inlined_call_operand.vmem [shape: f32[6,512], index: 3, kind: input, shape index: {}]
  %s4 = inlined_call_operand.vmem [shape: f32[2,512], index: 4, kind: output, shape index: {}]
  %s5 = sld [smem:[#allocation0]]
  $region34: #{rnd_minigrid_forward.1} parent=0
    _
  %s7 = ssub.s32 1, %s5
  %s8 = scalar_select 0, %s7, %s5
  $region1: #{rnd_minigrid_forward.1} parent=0
    #allocation6 [shape = 'u8[557056]{0}', space=vmem, size = 0x88000, scoped, tag = 'input window, operand 1, single buffered']
    #allocation7 [shape = 's32[1]{0}', space=sflag, size = 0x4, scoped, tag = 'scoped memory for rnd_minigrid_forward.1']
    #allocation8 [shape = 'u8[1048576]{0}', space=vmem, size = 0x100000, scoped, tag = 'input window, operand 2, single buffered']
    #allocation9 [shape = 's32[1]{0}', space=sflag, size = 0x4, scoped, tag = 'scoped memory for rnd_minigrid_forward.1']
    %9 = vsyncpa [#allocation7], 0
    %10 = vsyncpa [#allocation9], 0
    // Predicated region
    $region2: #{rnd_minigrid_forward.1} parent=1 // pred_check
      _
    $region3: #{rnd_minigrid_forward.1} parent=1 // pred_check_branch
      %12 = sbr.rel (0) target = $region5
    $region4: #{rnd_minigrid_forward.1} parent=1 // pred_region
      _
    $region5: #{rnd_minigrid_forward.1} parent=1 // pred_fallthru
      _
    // Predicated region
    $region6: #{rnd_minigrid_forward.1} parent=1 // pred_check
      _
    $region7: #{rnd_minigrid_forward.1} parent=1 // pred_check_branch
      %14 = sbr.rel (0) target = $region9
    $region8: #{rnd_minigrid_forward.1} parent=1 // pred_region
      %16 = vsyncadd [#allocation7], 0
      %s17 = sshll.u32 %s1, 4
      %s18 = int_to_ptr.hbm [resolvable:$true] %s17
      %s19 = sshll.u32 [#allocation6], 4
      %s20 = int_to_ptr.vmem [resolvable:$true] %s19
      %25 = dma.hbm_to_vmem [thread:$0]  %s18, 17408, %s20, [#allocation7], 128, 128, 8
    $region9: #{rnd_minigrid_forward.1} parent=1 // pred_fallthru
      _
    // Predicated region
    $region10: #{rnd_minigrid_forward.1} parent=1 // pred_check
      _
    $region11: #{rnd_minigrid_forward.1} parent=1 // pred_check_branch
      %27 = sbr.rel (0) target = $region13
    $region12: #{rnd_minigrid_forward.1} parent=1 // pred_region
      %29 = vsyncadd [#allocation9], 0
      %s30 = sshll.u32 %s2, 4
      %s31 = int_to_ptr.hbm [resolvable:$true] %s30
      %s32 = sshll.u32 [#allocation8], 4
      %s33 = int_to_ptr.vmem [resolvable:$true] %s32
      %38 = dma.hbm_to_vmem [thread:$0]  %s31, 32768, %s33, [#allocation9], 256, 256, 16
    $region13: #{rnd_minigrid_forward.1} parent=1 // pred_fallthru
      _
    // Predicated region
    $region14: #{rnd_minigrid_forward.1} parent=1 // pred_check
      _
    $region15: #{rnd_minigrid_forward.1} parent=1 // pred_check_branch
      %40 = sbr.rel (0) target = $region17
    $region16: #{rnd_minigrid_forward.1} parent=1 // pred_region
      _
    $region17: #{rnd_minigrid_forward.1} parent=1 // pred_fallthru
      _
    // Predicated region
    $region18: #{rnd_minigrid_forward.1} parent=1 // pred_check
      _
    $region19: #{rnd_minigrid_forward.1} parent=1 // pred_check_branch
      %42 = sbr.rel (0) target = $region21
    $region20: #{rnd_minigrid_forward.1} parent=1 // pred_region
      %44 = dma.done [#allocation7], 17408
    $region21: #{rnd_minigrid_forward.1} parent=1 // pred_fallthru
      _
    // Predicated region
    $region22: #{rnd_minigrid_forward.1} parent=1 // pred_check
      _
    $region23: #{rnd_minigrid_forward.1} parent=1 // pred_check_branch
      %46 = sbr.rel (0) target = $region25
    $region24: #{rnd_minigrid_forward.1} parent=1 // pred_region
      %48 = dma.done [#allocation9], 32768
    $region25: #{rnd_minigrid_forward.1} parent=1 // pred_fallthru
      _
    %vm50 = vcmask 779264
    %51 = vst.msk [vmem:[#allocation2 + $0xe] sm:$0x3] %vm50, 0.0
    %52 = vst [vmem:[#allocation3 + $0x10] sm:$0xc0] 0.0
    %vm53 = vcmask 261126
    %54 = vst.msk [vmem:[#allocation3 + $0x18] sm:$0xc0] %vm53, 0.0
    %55 = vst [vmem:[#allocation5] sm:$0xff] 0.0
    %56 = vst [vmem:[#allocation5 + $0x8] sm:$0xff] 0.0
    %57 = vst [vmem:[#allocation5 + $0x10] sm:$0xff] 0.0
    %58 = vst [vmem:[#allocation5 + $0x18] sm:$0xff] 0.0
    %59 = vst [vmem:[#allocation5 + $0x20] sm:$0xff] 0.0
    %60 = vst [vmem:[#allocation5 + $0x28] sm:$0xff] 0.0
    %61 = vst [vmem:[#allocation5 + $0x30] sm:$0xff] 0.0
    %62 = vst [vmem:[#allocation5 + $0x38] sm:$0xff] 0.0
    %v63 = vld [vmem:[%s0] sm:$0xff]
    %v64 = vld [vmem:[%s0 + $0x8] sm:$0x3f]
    %v65 = vpack.c.bf16 %v64, %v63
    %v66 = vld [vmem:[%s0 + $0x1] sm:$0xff]
    %v67 = vld [vmem:[%s0 + $0x9] sm:$0x3f]
    %v68 = vpack.c.bf16 %v67, %v66
    %v69 = vld [vmem:[#allocation6] sm:$0xf]
    %v70 = vld [vmem:[#allocation6 + $0x8] sm:$0xf]
    %v71 = vld [vmem:[#allocation6 + $0x10] sm:$0xf]
    %v72 = vld [vmem:[#allocation6 + $0x18] sm:$0x3]
    %v73 = vld [vmem:[#allocation6 + $0x20] sm:$0xf]
    %v74 = vld [vmem:[#allocation6 + $0x28] sm:$0xf]
    %v75 = vld [vmem:[#allocation6 + $0x30] sm:$0xf]
    %v76 = vld [vmem:[#allocation6 + $0x38] sm:$0x3]
    %v81 = vunpack.c.l.b16 %v73
    %v82 = vunpack.c.l.b16 %v74
    %v83 = vunpack.c.l.b16 %v75
    %v84 = vunpack.c.l.b16 %v76
    %v85 = vpack.c.b16 %v82, %v81
    %v86 = vpack.c.b16 %v84, %v83
    %vm88 = vcmask 228352
    %v90 = vsel %vm88, %v68, 0
    %vm92 = vcmask 1045504
    %v94 = vsel %vm92, %v86, 0
    %96 = vmatpush.bf16.msra.mxu0 0
    %97 = vmatpush.bf16.msra.mxu0 0
    %98 = vmatpush.bf16.msra.mxu0 0
    %99 = vmatpush.bf16.msra.mxu0 0
    %100 = vmatpush.bf16.msra.mxu0 0
    %101 = vmatpush.bf16.msra.mxu0 0
    %102 = vmatpush.bf16.msra.mxu0 %v94
    %103 = vmatpush.bf16.msra.mxu0 %v85
    %104 = vmatmul.bf16.gmra.mxu0 %v90
    %v105 = vpop.f32.mrf.mxu0
    %v106 = vadd.f32 0.0, %v105
    %v107 = vpop.f32.mrf.mxu0
    %v108 = vadd.f32 0.0, %v107
    %109 = vdwg.mxu0
    %v114 = vunpack.c.l.b16 %v69
    %v115 = vunpack.c.l.b16 %v70
    %v116 = vunpack.c.l.b16 %v71
    %v117 = vunpack.c.l.b16 %v72
    %v118 = vpack.c.b16 %v115, %v114
    %v119 = vpack.c.b16 %v117, %v116
    %v122 = vsel %vm88, %v65, 0
    %v125 = vsel %vm92, %v119, 0
    %127 = vmatpush.bf16.msra.mxu0 0
    %128 = vmatpush.bf16.msra.mxu0 0
    %129 = vmatpush.bf16.msra.mxu0 0
    %130 = vmatpush.bf16.msra.mxu0 0
    %131 = vmatpush.bf16.msra.mxu0 0
    %132 = vmatpush.bf16.msra.mxu0 0
    %133 = vmatpush.bf16.msra.mxu0 %v125
    %134 = vmatpush.bf16.msra.mxu0 %v118
    %135 = vmatmul.bf16.gmra.mxu0 %v122
    %v136 = vpop.f32.mrf.mxu0
    %v137 = vadd.f32 %v106, %v136
    %v138 = vpop.f32.mrf.mxu0
    %v139 = vadd.f32 %v108, %v138
    %140 = vdwg.mxu0
    %v141 = vld [vmem:[%s3] ss:$0 sm:$0xff]
    %v142 = vadd.f32 %v137, %v141
    %v143 = vadd.f32 %v139, %v141
    %v144 = vmax.f32 %v142, 0.0
    %v145 = vmax.f32 %v143, 0.0
    %vm146 = vcmask 785408
    %147 = vst.msk [vmem:[#allocation2] sm:$0xff] %vm146, %v144
    %vm148 = vcmask 783360
    %149 = vst.msk [vmem:[#allocation2 + $0x8] sm:$0x3f] %vm148, %v145
    %v150 = vld [vmem:[#allocation2] sm:$0xff]
    %v151 = vld [vmem:[#allocation2 + $0x8] sm:$0x3f]
    %v152 = vpack.c.bf16 %v151, %v150
    %v153 = vld [vmem:[#allocation2 + $0x1] sm:$0xff]
    %v154 = vld [vmem:[#allocation2 + $0x9] sm:$0x3f]
    %v155 = vpack.c.bf16 %v154, %v153
    %v156 = vld [vmem:[#allocation6 + $0x40] sm:$0xff]
    %v157 = vld [vmem:[#allocation6 + $0x48] sm:$0xff]
    %v158 = vld [vmem:[#allocation6 + $0x50] sm:$0xff]
    %v159 = vld [vmem:[#allocation6 + $0x58] sm:$0xff]
    %v160 = vld [vmem:[#allocation6 + $0x60] sm:$0xff]
    %v161 = vld [vmem:[#allocation6 + $0x68] sm:$0xff]
    %v162 = vld [vmem:[#allocation6 + $0x70] sm:$0xff]
    %v163 = vld [vmem:[#allocation6 + $0x78] sm:$0xff]
    %v164 = vld [vmem:[#allocation6 + $0x80] sm:$0xff]
    %v165 = vld [vmem:[#allocation6 + $0x88] sm:$0xff]
    %v166 = vld [vmem:[#allocation6 + $0x90] sm:$0xff]
    %v167 = vld [vmem:[#allocation6 + $0x98] sm:$0xff]
    %v168 = vld [vmem:[#allocation6 + $0xa0] sm:$0xff]
    %v169 = vld [vmem:[#allocation6 + $0xa8] sm:$0xff]
    %v170 = vld [vmem:[#allocation6 + $0xb0] sm:$0xff]
    %v171 = vld [vmem:[#allocation6 + $0xb8] sm:$0xff]
    %v172 = vld [vmem:[#allocation6 + $0xc0] sm:$0xff]
    %v173 = vld [vmem:[#allocation6 + $0xc8] sm:$0xff]
    %v174 = vld [vmem:[#allocation6 + $0xd0] sm:$0xff]
    %v175 = vld [vmem:[#allocation6 + $0xd8] sm:$0xff]
    %v176 = vld [vmem:[#allocation6 + $0xe0] sm:$0xff]
    %v177 = vld [vmem:[#allocation6 + $0xe8] sm:$0xff]
    %v178 = vld [vmem:[#allocation6 + $0xf0] sm:$0xff]
    %v179 = vld [vmem:[#allocation6 + $0xf8] sm:$0xff]
    %v192 = vunpack.c.l.b16 %v168
    %v193 = vunpack.c.h.b16 %v168
    %v194 = vunpack.c.l.b16 %v169
    %v195 = vunpack.c.h.b16 %v169
    %v196 = vunpack.c.l.b16 %v170
    %v197 = vunpack.c.h.b16 %v170
    %v198 = vunpack.c.l.b16 %v171
    %v199 = vunpack.c.h.b16 %v171
    %v200 = vunpack.c.l.b16 %v172
    %v201 = vunpack.c.h.b16 %v172
    %v202 = vunpack.c.l.b16 %v173
    %v203 = vunpack.c.h.b16 %v173
    %v204 = vunpack.c.l.b16 %v174
    %v205 = vunpack.c.h.b16 %v174
    %v206 = vunpack.c.l.b16 %v175
    %v207 = vunpack.c.h.b16 %v175
    %v208 = vunpack.c.l.b16 %v176
    %v209 = vunpack.c.h.b16 %v176
    %v210 = vunpack.c.l.b16 %v177
    %v211 = vunpack.c.h.b16 %v177
    %v212 = vunpack.c.l.b16 %v178
    %v213 = vunpack.c.h.b16 %v178
    %v214 = vunpack.c.l.b16 %v179
    %v215 = vunpack.c.h.b16 %v179
    %v216 = vpack.c.b16 %v194, %v192
    %v217 = vpack.c.b16 %v195, %v193
    %v218 = vpack.c.b16 %v198, %v196
    %v219 = vpack.c.b16 %v199, %v197
    %v220 = vpack.c.b16 %v202, %v200
    %v221 = vpack.c.b16 %v203, %v201
    %v222 = vpack.c.b16 %v206, %v204
    %v223 = vpack.c.b16 %v207, %v205
    %v224 = vpack.c.b16 %v210, %v208
    %v225 = vpack.c.b16 %v211, %v209
    %v226 = vpack.c.b16 %v214, %v212
    %v227 = vpack.c.b16 %v215, %v213
    %v241 = vsel %vm146, %v155, 0
    %243 = vmatpush.bf16.msra.mxu0 0
    %244 = vmatpush.bf16.msra.mxu0 0
    %245 = vmatpush.bf16.msra.mxu0 %v226
    %246 = vmatpush.bf16.msra.mxu0 %v224
    %247 = vmatpush.bf16.msra.mxu0 %v222
    %248 = vmatpush.bf16.msra.mxu0 %v220
    %249 = vmatpush.bf16.msra.mxu0 %v218
    %250 = vmatpush.bf16.msra.mxu0 %v216
    %251 = vmatmul.bf16.gmra.mxu0 %v241
    %v252 = vpop.f32.mrf.mxu0
    %v253 = vadd.f32 0.0, %v252
    %v254 = vpop.f32.mrf.mxu0
    %v255 = vadd.f32 0.0, %v254
    %256 = vdwg.mxu0
    %257 = vmatpush.bf16.msra.mxu0 0
    %258 = vmatpush.bf16.msra.mxu0 0
    %259 = vmatpush.bf16.msra.mxu0 %v227
    %260 = vmatpush.bf16.msra.mxu0 %v225
    %261 = vmatpush.bf16.msra.mxu0 %v223
    %262 = vmatpush.bf16.msra.mxu0 %v221
    %263 = vmatpush.bf16.msra.mxu0 %v219
    %264 = vmatpush.bf16.msra.mxu0 %v217
    %265 = vmatmul.bf16.gmra.mxu0 %v241
    %v266 = vpop.f32.mrf.mxu0
    %v267 = vadd.f32 0.0, %v266
    %v268 = vpop.f32.mrf.mxu0
    %v269 = vadd.f32 0.0, %v268
    %270 = vdwg.mxu0
    %v283 = vunpack.c.l.b16 %v156
    %v284 = vunpack.c.h.b16 %v156
    %v285 = vunpack.c.l.b16 %v157
    %v286 = vunpack.c.h.b16 %v157
    %v287 = vunpack.c.l.b16 %v158
    %v288 = vunpack.c.h.b16 %v158
    %v289 = vunpack.c.l.b16 %v159
    %v290 = vunpack.c.h.b16 %v159
    %v291 = vunpack.c.l.b16 %v160
    %v292 = vunpack.c.h.b16 %v160
    %v293 = vunpack.c.l.b16 %v161
    %v294 = vunpack.c.h.b16 %v161
    %v295 = vunpack.c.l.b16 %v162
    %v296 = vunpack.c.h.b16 %v162
    %v297 = vunpack.c.l.b16 %v163
    %v298 = vunpack.c.h.b16 %v163
    %v299 = vunpack.c.l.b16 %v164
    %v300 = vunpack.c.h.b16 %v164
    %v301 = vunpack.c.l.b16 %v165
    %v302 = vunpack.c.h.b16 %v165
    %v303 = vunpack.c.l.b16 %v166
    %v304 = vunpack.c.h.b16 %v166
    %v305 = vunpack.c.l.b16 %v167
    %v306 = vunpack.c.h.b16 %v167
    %v307 = vpack.c.b16 %v285, %v283
    %v308 = vpack.c.b16 %v286, %v284
    %v309 = vpack.c.b16 %v289, %v287
    %v310 = vpack.c.b16 %v290, %v288
    %v311 = vpack.c.b16 %v293, %v291
    %v312 = vpack.c.b16 %v294, %v292
    %v313 = vpack.c.b16 %v297, %v295
    %v314 = vpack.c.b16 %v298, %v296
    %v315 = vpack.c.b16 %v301, %v299
    %v316 = vpack.c.b16 %v302, %v300
    %v317 = vpack.c.b16 %v305, %v303
    %v318 = vpack.c.b16 %v306, %v304
    %v332 = vsel %vm146, %v152, 0
    %334 = vmatpush.bf16.msra.mxu0 0
    %335 = vmatpush.bf16.msra.mxu0 0
    %336 = vmatpush.bf16.msra.mxu0 %v317
    %337 = vmatpush.bf16.msra.mxu0 %v315
    %338 = vmatpush.bf16.msra.mxu0 %v313
    %339 = vmatpush.bf16.msra.mxu0 %v311
    %340 = vmatpush.bf16.msra.mxu0 %v309
    %341 = vmatpush.bf16.msra.mxu0 %v307
    %342 = vmatmul.bf16.gmra.mxu0 %v332
    %v343 = vpop.f32.mrf.mxu0
    %v344 = vadd.f32 %v253, %v343
    %v345 = vpop.f32.mrf.mxu0
    %v346 = vadd.f32 %v255, %v345
    %347 = vdwg.mxu0
    %348 = vmatpush.bf16.msra.mxu0 0
    %349 = vmatpush.bf16.msra.mxu0 0
    %350 = vmatpush.bf16.msra.mxu0 %v318
    %351 = vmatpush.bf16.msra.mxu0 %v316
    %352 = vmatpush.bf16.msra.mxu0 %v314
    %353 = vmatpush.bf16.msra.mxu0 %v312
    %354 = vmatpush.bf16.msra.mxu0 %v310
    %355 = vmatpush.bf16.msra.mxu0 %v308
    %356 = vmatmul.bf16.gmra.mxu0 %v332
    %v357 = vpop.f32.mrf.mxu0
    %v358 = vadd.f32 %v267, %v357
    %v359 = vpop.f32.mrf.mxu0
    %v360 = vadd.f32 %v269, %v359
    %361 = vdwg.mxu0
    %s362 = scalar_lea.vmem %s3, 1
    %v363 = vld [vmem:[%s362] ss:$8 sm:$0x3]
    %v365 = vperm.slane %v363, 0
    %v366 = vperm.slane %v363, 1
    %v369 = vadd.f32 %v344, %v365
    %v370 = vadd.f32 %v358, %v366
    %v371 = vadd.f32 %v346, %v365
    %v372 = vadd.f32 %v360, %v366
    %v373 = vmax.f32 %v369, 0.0
    %v374 = vmax.f32 %v370, 0.0
    %v375 = vmax.f32 %v371, 0.0
    %v376 = vmax.f32 %v372, 0.0
    %377 = vst [vmem:[#allocation3] sm:$0xff] %v373
    %vm378 = vcmask 261120
    %379 = vst.msk [vmem:[#allocation3 + $0x8] sm:$0xff] %vm378, %v374
    %380 = vst [vmem:[#allocation3 + $0x10] sm:$0x3f] %v375
    %vm381 = vcmask 259072
    %382 = vst.msk [vmem:[#allocation3 + $0x18] sm:$0x3f] %vm381, %v376
    %v383 = vld [vmem:[#allocation3] sm:$0xff]
    %v384 = vld [vmem:[#allocation3 + $0x8] sm:$0xff]
    %v385 = vld [vmem:[#allocation3 + $0x10] sm:$0x3f]
    %v386 = vld [vmem:[#allocation3 + $0x18] sm:$0x3f]
    %v387 = vpack.c.bf16 %v385, %v383
    %v388 = vpack.c.bf16 %v386, %v384
    %v389 = vld [vmem:[#allocation3] sm:$0xfe]
    %v390 = vld [vmem:[#allocation3 + $0x8] sm:$0xfe]
    %v391 = vld [vmem:[#allocation3 + $0x10] sm:$0x7f]
    %v392 = vld [vmem:[#allocation3 + $0x18] sm:$0x7f]
    %v393 = vpack.c.bf16 %v391, %v389
    %v394 = vpack.c.bf16 %v392, %v390
    %v395 = vld [vmem:[#allocation6 + $0x100] sm:$0xff]
    %v396 = vld [vmem:[#allocation6 + $0x108] sm:$0xff]
    %v397 = vld [vmem:[#allocation6 + $0x110] sm:$0xff]
    %v398 = vld [vmem:[#allocation6 + $0x118] sm:$0xff]
    %v399 = vld [vmem:[#allocation6 + $0x120] sm:$0xff]
    %v400 = vld [vmem:[#allocation6 + $0x128] sm:$0xff]
    %v401 = vld [vmem:[#allocation6 + $0x130] sm:$0xff]
    %v402 = vld [vmem:[#allocation6 + $0x138] sm:$0xff]
    %v403 = vld [vmem:[#allocation6 + $0x140] sm:$0xff]
    %v404 = vld [vmem:[#allocation6 + $0x148] sm:$0xff]
    %v405 = vld [vmem:[#allocation6 + $0x150] sm:$0xff]
    %v406 = vld [vmem:[#allocation6 + $0x158] sm:$0xff]
    %v407 = vld [vmem:[#allocation6 + $0x160] sm:$0xff]
    %v408 = vld [vmem:[#allocation6 + $0x168] sm:$0xff]
    %v409 = vld [vmem:[#allocation6 + $0x170] sm:$0xff]
    %v410 = vld [vmem:[#allocation6 + $0x178] sm:$0xff]
    %v411 = vld [vmem:[#allocation6 + $0x180] sm:$0xff]
    %v412 = vld [vmem:[#allocation6 + $0x188] sm:$0xff]
    %v413 = vld [vmem:[#allocation6 + $0x190] sm:$0xff]
    %v414 = vld [vmem:[#allocation6 + $0x198] sm:$0xff]
    %v415 = vld [vmem:[#allocation6 + $0x1a0] sm:$0xff]
    %v416 = vld [vmem:[#allocation6 + $0x1a8] sm:$0xff]
    %v417 = vld [vmem:[#allocation6 + $0x1b0] sm:$0xff]
    %v418 = vld [vmem:[#allocation6 + $0x1b8] sm:$0xff]
    %v419 = vld [vmem:[#allocation6 + $0x1c0] sm:$0xff]
    %v420 = vld [vmem:[#allocation6 + $0x1c8] sm:$0xff]
    %v421 = vld [vmem:[#allocation6 + $0x1d0] sm:$0xff]
    %v422 = vld [vmem:[#allocation6 + $0x1d8] sm:$0xff]
    %v423 = vld [vmem:[#allocation6 + $0x1e0] sm:$0xff]
    %v424 = vld [vmem:[#allocation6 + $0x1e8] sm:$0xff]
    %v425 = vld [vmem:[#allocation6 + $0x1f0] sm:$0xff]
    %v426 = vld [vmem:[#allocation6 + $0x1f8] sm:$0xff]
    %v427 = vld [vmem:[#allocation6 + $0x200] sm:$0xff]
    %v428 = vld [vmem:[#allocation6 + $0x208] sm:$0xff]
    %v429 = vld [vmem:[#allocation6 + $0x210] sm:$0xff]
    %v430 = vld [vmem:[#allocation6 + $0x218] sm:$0xff]
    %v431 = vld [vmem:[#allocation6 + $0x220] sm:$0xff]
    %v432 = vld [vmem:[#allocation6 + $0x228] sm:$0xff]
    %v433 = vld [vmem:[#allocation6 + $0x230] sm:$0xff]
    %v434 = vld [vmem:[#allocation6 + $0x238] sm:$0xff]
    %v436 = vshrl.u32 %v393, 16
    %v438 = vshll.u32 %v393, 16
    %v440 = vrot.slane %v438, 1
    %v441 = vor.u32 %v436, %v440
    %v443 = vshrl.u32 %v394, 16
    %v445 = vshll.u32 %v394, 16
    %v447 = vrot.slane %v445, 1
    %v448 = vor.u32 %v443, %v447
    %v470 = vunpack.c.l.b16 %v415
    %v471 = vunpack.c.h.b16 %v415
    %v472 = vunpack.c.l.b16 %v416
    %v473 = vunpack.c.h.b16 %v416
    %v474 = vunpack.c.l.b16 %v417
    %v475 = vunpack.c.h.b16 %v417
    %v476 = vunpack.c.l.b16 %v418
    %v477 = vunpack.c.h.b16 %v418
    %v478 = vunpack.c.l.b16 %v419
    %v479 = vunpack.c.h.b16 %v419
    %v480 = vunpack.c.l.b16 %v420
    %v481 = vunpack.c.h.b16 %v420
    %v482 = vunpack.c.l.b16 %v421
    %v483 = vunpack.c.h.b16 %v421
    %v484 = vunpack.c.l.b16 %v422
    %v485 = vunpack.c.h.b16 %v422
    %v486 = vunpack.c.l.b16 %v423
    %v487 = vunpack.c.h.b16 %v423
    %v488 = vunpack.c.l.b16 %v424
    %v489 = vunpack.c.h.b16 %v424
    %v490 = vunpack.c.l.b16 %v425
    %v491 = vunpack.c.h.b16 %v425
    %v492 = vunpack.c.l.b16 %v426
    %v493 = vunpack.c.h.b16 %v426
    %v494 = vunpack.c.l.b16 %v427
    %v495 = vunpack.c.h.b16 %v427
    %v496 = vunpack.c.l.b16 %v428
    %v497 = vunpack.c.h.b16 %v428
    %v498 = vunpack.c.l.b16 %v429
    %v499 = vunpack.c.h.b16 %v429
    %v500 = vunpack.c.l.b16 %v430
    %v501 = vunpack.c.h.b16 %v430
    %v502 = vunpack.c.l.b16 %v431
    %v503 = vunpack.c.h.b16 %v431
    %v504 = vunpack.c.l.b16 %v432
    %v505 = vunpack.c.h.b16 %v432
    %v506 = vunpack.c.l.b16 %v433
    %v507 = vunpack.c.h.b16 %v433
    %v508 = vunpack.c.l.b16 %v434
    %v509 = vunpack.c.h.b16 %v434
    %v510 = vpack.c.b16 %v472, %v470
    %v511 = vpack.c.b16 %v473, %v471
    %v512 = vpack.c.b16 %v476, %v474
    %v513 = vpack.c.b16 %v477, %v475
    %v514 = vpack.c.b16 %v480, %v478
    %v515 = vpack.c.b16 %v481, %v479
    %v516 = vpack.c.b16 %v484, %v482
    %v517 = vpack.c.b16 %v485, %v483
    %v518 = vpack.c.b16 %v488, %v486
    %v519 = vpack.c.b16 %v489, %v487
    %v520 = vpack.c.b16 %v492, %v490
    %v521 = vpack.c.b16 %v493, %v491
    %v522 = vpack.c.b16 %v496, %v494
    %v523 = vpack.c.b16 %v497, %v495
    %v524 = vpack.c.b16 %v500, %v498
    %v525 = vpack.c.b16 %v501, %v499
    %v526 = vpack.c.b16 %v504, %v502
    %v527 = vpack.c.b16 %v505, %v503
    %v528 = vpack.c.b16 %v508, %v506
    %v529 = vpack.c.b16 %v509, %v507
    %v551 = vsel %vm378, %v448, 0
    %553 = vmatpush.bf16.msra.mxu0 %v524
    %554 = vmatpush.bf16.msra.mxu0 %v522
    %555 = vmatpush.bf16.msra.mxu0 %v520
    %556 = vmatpush.bf16.msra.mxu0 %v518
    %557 = vmatpush.bf16.msra.mxu0 %v516
    %558 = vmatpush.bf16.msra.mxu0 %v514
    %559 = vmatpush.bf16.msra.mxu0 %v512
    %560 = vmatpush.bf16.msra.mxu0 %v510
    %561 = vmatmul.bf16.gmra.mxu0 %v441
    %v562 = vpop.f32.mrf.mxu0
    %v563 = vadd.f32 0.0, %v562
    %v564 = vpop.f32.mrf.mxu0
    %v565 = vadd.f32 0.0, %v564
    %566 = vdwg.mxu0
    %567 = vmatpush.bf16.msra.mxu0 0
    %568 = vmatpush.bf16.msra.mxu0 0
    %569 = vmatpush.bf16.msra.mxu0 0
    %570 = vmatpush.bf16.msra.mxu0 0
    %571 = vmatpush.bf16.msra.mxu0 0
    %572 = vmatpush.bf16.msra.mxu0 0
    %573 = vmatpush.bf16.msra.mxu0 %v528
    %574 = vmatpush.bf16.msra.mxu0 %v526
    %575 = vmatmul.bf16.gmra.mxu0 %v551
    %v576 = vpop.f32.mrf.mxu0
    %v577 = vadd.f32 %v563, %v576
    %v578 = vpop.f32.mrf.mxu0
    %v579 = vadd.f32 %v565, %v578
    %580 = vdwg.mxu0
    %581 = vmatpush.bf16.msra.mxu0 %v525
    %582 = vmatpush.bf16.msra.mxu0 %v523
    %583 = vmatpush.bf16.msra.mxu0 %v521
    %584 = vmatpush.bf16.msra.mxu0 %v519
    %585 = vmatpush.bf16.msra.mxu0 %v517
    %586 = vmatpush.bf16.msra.mxu0 %v515
    %587 = vmatpush.bf16.msra.mxu0 %v513
    %588 = vmatpush.bf16.msra.mxu0 %v511
    %589 = vmatmul.bf16.gmra.mxu0 %v441
    %v590 = vpop.f32.mrf.mxu0
    %v591 = vadd.f32 0.0, %v590
    %v592 = vpop.f32.mrf.mxu0
    %v593 = vadd.f32 0.0, %v592
    %594 = vdwg.mxu0
    %595 = vmatpush.bf16.msra.mxu0 0
    %596 = vmatpush.bf16.msra.mxu0 0
    %597 = vmatpush.bf16.msra.mxu0 0
    %598 = vmatpush.bf16.msra.mxu0 0
    %599 = vmatpush.bf16.msra.mxu0 0
    %600 = vmatpush.bf16.msra.mxu0 0
    %601 = vmatpush.bf16.msra.mxu0 %v529
    %602 = vmatpush.bf16.msra.mxu0 %v527
    %603 = vmatmul.bf16.gmra.mxu0 %v551
    %v604 = vpop.f32.mrf.mxu0
    %v605 = vadd.f32 %v591, %v604
    %v606 = vpop.f32.mrf.mxu0
    %v607 = vadd.f32 %v593, %v606
    %608 = vdwg.mxu0
    %v629 = vunpack.c.l.b16 %v395
    %v630 = vunpack.c.h.b16 %v395
    %v631 = vunpack.c.l.b16 %v396
    %v632 = vunpack.c.h.b16 %v396
    %v633 = vunpack.c.l.b16 %v397
    %v634 = vunpack.c.h.b16 %v397
    %v635 = vunpack.c.l.b16 %v398
    %v636 = vunpack.c.h.b16 %v398
    %v637 = vunpack.c.l.b16 %v399
    %v638 = vunpack.c.h.b16 %v399
    %v639 = vunpack.c.l.b16 %v400
    %v640 = vunpack.c.h.b16 %v400
    %v641 = vunpack.c.l.b16 %v401
    %v642 = vunpack.c.h.b16 %v401
    %v643 = vunpack.c.l.b16 %v402
    %v644 = vunpack.c.h.b16 %v402
    %v645 = vunpack.c.l.b16 %v403
    %v646 = vunpack.c.h.b16 %v403
    %v647 = vunpack.c.l.b16 %v404
    %v648 = vunpack.c.h.b16 %v404
    %v649 = vunpack.c.l.b16 %v405
    %v650 = vunpack.c.h.b16 %v405
    %v651 = vunpack.c.l.b16 %v406
    %v652 = vunpack.c.h.b16 %v406
    %v653 = vunpack.c.l.b16 %v407
    %v654 = vunpack.c.h.b16 %v407
    %v655 = vunpack.c.l.b16 %v408
    %v656 = vunpack.c.h.b16 %v408
    %v657 = vunpack.c.l.b16 %v409
    %v658 = vunpack.c.h.b16 %v409
    %v659 = vunpack.c.l.b16 %v410
    %v660 = vunpack.c.h.b16 %v410
    %v661 = vunpack.c.l.b16 %v411
    %v662 = vunpack.c.h.b16 %v411
    %v663 = vunpack.c.l.b16 %v412
    %v664 = vunpack.c.h.b16 %v412
    %v665 = vunpack.c.l.b16 %v413
    %v666 = vunpack.c.h.b16 %v413
    %v667 = vunpack.c.l.b16 %v414
    %v668 = vunpack.c.h.b16 %v414
    %v669 = vpack.c.b16 %v631, %v629
    %v670 = vpack.c.b16 %v632, %v630
    %v671 = vpack.c.b16 %v635, %v633
    %v672 = vpack.c.b16 %v636, %v634
    %v673 = vpack.c.b16 %v639, %v637
    %v674 = vpack.c.b16 %v640, %v638
    %v675 = vpack.c.b16 %v643, %v641
    %v676 = vpack.c.b16 %v644, %v642
    %v677 = vpack.c.b16 %v647, %v645
    %v678 = vpack.c.b16 %v648, %v646
    %v679 = vpack.c.b16 %v651, %v649
    %v680 = vpack.c.b16 %v652, %v650
    %v681 = vpack.c.b16 %v655, %v653
    %v682 = vpack.c.b16 %v656, %v654
    %v683 = vpack.c.b16 %v659, %v657
    %v684 = vpack.c.b16 %v660, %v658
    %v685 = vpack.c.b16 %v663, %v661
    %v686 = vpack.c.b16 %v664, %v662
    %v687 = vpack.c.b16 %v667, %v665
    %v688 = vpack.c.b16 %v668, %v666
    %v710 = vsel %vm378, %v388, 0
    %712 = vmatpush.bf16.msra.mxu0 %v683
    %713 = vmatpush.bf16.msra.mxu0 %v681
    %714 = vmatpush.bf16.msra.mxu0 %v679
    %715 = vmatpush.bf16.msra.mxu0 %v677
    %716 = vmatpush.bf16.msra.mxu0 %v675
    %717 = vmatpush.bf16.msra.mxu0 %v673
    %718 = vmatpush.bf16.msra.mxu0 %v671
    %719 = vmatpush.bf16.msra.mxu0 %v669
    %720 = vmatmul.bf16.gmra.mxu0 %v387
    %v721 = vpop.f32.mrf.mxu0
    %v722 = vadd.f32 %v577, %v721
    %v723 = vpop.f32.mrf.mxu0
    %v724 = vadd.f32 %v579, %v723
    %725 = vdwg.mxu0
    %726 = vmatpush.bf16.msra.mxu0 0
    %727 = vmatpush.bf16.msra.mxu0 0
    %728 = vmatpush.bf16.msra.mxu0 0
    %729 = vmatpush.bf16.msra.mxu0 0
    %730 = vmatpush.bf16.msra.mxu0 0
    %731 = vmatpush.bf16.msra.mxu0 0
    %732 = vmatpush.bf16.msra.mxu0 %v687
    %733 = vmatpush.bf16.msra.mxu0 %v685
    %734 = vmatmul.bf16.gmra.mxu0 %v710
    %v735 = vpop.f32.mrf.mxu0
    %v736 = vadd.f32 %v722, %v735
    %v737 = vpop.f32.mrf.mxu0
    %v738 = vadd.f32 %v724, %v737
    %739 = vdwg.mxu0
    %740 = vmatpush.bf16.msra.mxu0 %v684
    %741 = vmatpush.bf16.msra.mxu0 %v682
    %742 = vmatpush.bf16.msra.mxu0 %v680
    %743 = vmatpush.bf16.msra.mxu0 %v678
    %744 = vmatpush.bf16.msra.mxu0 %v676
    %745 = vmatpush.bf16.msra.mxu0 %v674
    %746 = vmatpush.bf16.msra.mxu0 %v672
    %747 = vmatpush.bf16.msra.mxu0 %v670
    %748 = vmatmul.bf16.gmra.mxu0 %v387
    %v749 = vpop.f32.mrf.mxu0
    %v750 = vadd.f32 %v605, %v749
    %v751 = vpop.f32.mrf.mxu0
    %v752 = vadd.f32 %v607, %v751
    %753 = vdwg.mxu0
    %754 = vmatpush.bf16.msra.mxu0 0
    %755 = vmatpush.bf16.msra.mxu0 0
    %756 = vmatpush.bf16.msra.mxu0 0
    %757 = vmatpush.bf16.msra.mxu0 0
    %758 = vmatpush.bf16.msra.mxu0 0
    %759 = vmatpush.bf16.msra.mxu0 0
    %760 = vmatpush.bf16.msra.mxu0 %v688
    %761 = vmatpush.bf16.msra.mxu0 %v686
    %762 = vmatmul.bf16.gmra.mxu0 %v710
    %v763 = vpop.f32.mrf.mxu0
    %v764 = vadd.f32 %v750, %v763
    %v765 = vpop.f32.mrf.mxu0
    %v766 = vadd.f32 %v752, %v765
    %767 = vdwg.mxu0
    %s768 = scalar_lea.vmem %s3, 2
    %v769 = vld [vmem:[%s768] ss:$8 sm:$0x3]
    %v771 = vperm.slane %v769, 0
    %v772 = vperm.slane %v769, 1
    %v775 = vadd.f32 %v736, %v771
    %v776 = vadd.f32 %v764, %v772
    %v777 = vadd.f32 %v738, %v771
    %v778 = vadd.f32 %v766, %v772
    %v779 = vmax.f32 %v775, 0.0
    %v780 = vmax.f32 %v776, 0.0
    %v781 = vmax.f32 %v777, 0.0
    %v782 = vmax.f32 %v778, 0.0
    %783 = vst [vmem:[#allocation4] sm:$0xff] %v779
    %784 = vst [vmem:[#allocation4 + $0x8] sm:$0xff] %v780
    %785 = vst [vmem:[#allocation4 + $0x10] sm:$0x3f] %v781
    %786 = vst [vmem:[#allocation4 + $0x18] sm:$0x3f] %v782
    %v787 = vld [vmem:[#allocation4] ss:$8 sm:$0x3]
    %v788 = vlaneseq
    %vm789 = vcmp.ge.s32.totalorder %v788, 0
    %vm790 = vcmp.lt.s32.totalorder %v788, 256
    %vm791 = vmand %vm789, %vm790
    %792 = vst.msk [vmem:[#allocation5] ss:$8 sm:$0x3] %vm791, %v787
    %793 = vst.msk [vmem:[#allocation5] ss:$8 sm:$0x0] %vm791, %v787
    %s794 = scalar_lea.vmem [#allocation4], 1
    %v795 = vld [vmem:[%s794] ss:$8 sm:$0x3]
    %s796 = scalar_lea.vmem [#allocation5], 16
    %797 = vst.msk [vmem:[%s796] ss:$8 sm:$0x3] %vm791, %v795
    %798 = vst.msk [vmem:[%s796] ss:$8 sm:$0x0] %vm791, %v795
    %s799 = scalar_lea.vmem [#allocation4], 2
    %v800 = vld [vmem:[%s799] ss:$8 sm:$0x3]
    %s801 = scalar_lea.vmem [#allocation5], 32
    %802 = vst.msk [vmem:[%s801] ss:$8 sm:$0x3] %vm791, %v800
    %803 = vst.msk [vmem:[%s801] ss:$8 sm:$0x0] %vm791, %v800
    %s804 = scalar_lea.vmem [#allocation4], 3
    %v805 = vld [vmem:[%s804] ss:$8 sm:$0x3]
    %s806 = scalar_lea.vmem [#allocation5], 48
    %807 = vst.msk [vmem:[%s806] ss:$8 sm:$0x3] %vm791, %v805
    %808 = vst.msk [vmem:[%s806] ss:$8 sm:$0x0] %vm791, %v805
    %s809 = scalar_lea.vmem [#allocation4], 7
    %v810 = vld [vmem:[%s809] ss:$8 sm:$0x3]
    %s811 = scalar_lea.vmem [#allocation5], 1
    %812 = vst.msk [vmem:[%s811] ss:$8 sm:$0x3] %vm791, %v810
    %813 = vst.msk [vmem:[%s811] ss:$8 sm:$0x0] %vm791, %v810
    %s814 = scalar_lea.vmem [#allocation4], 16
    %v815 = vld [vmem:[%s814] ss:$8 sm:$0x3]
    %s816 = scalar_lea.vmem [#allocation5], 17
    %817 = vst.msk [vmem:[%s816] ss:$8 sm:$0x3] %vm791, %v815
    %818 = vst.msk [vmem:[%s816] ss:$8 sm:$0x0] %vm791, %v815
    %s819 = scalar_lea.vmem [#allocation4], 17
    %v820 = vld [vmem:[%s819] ss:$8 sm:$0x3]
    %s821 = scalar_lea.vmem [#allocation5], 33
    %822 = vst.msk [vmem:[%s821] ss:$8 sm:$0x3] %vm791, %v820
    %823 = vst.msk [vmem:[%s821] ss:$8 sm:$0x0] %vm791, %v820
    %s824 = scalar_lea.vmem [#allocation4], 18
    %v825 = vld [vmem:[%s824] ss:$8 sm:$0x3]
    %s826 = scalar_lea.vmem [#allocation5], 49
    %827 = vst.msk [vmem:[%s826] ss:$8 sm:$0x3] %vm791, %v825
    %828 = vst.msk [vmem:[%s826] ss:$8 sm:$0x0] %vm791, %v825
    %v829 = vld [vmem:[#allocation5] sm:$0xff]
    %v830 = vld [vmem:[#allocation5 + $0x8] sm:$0xff]
    %v831 = vld [vmem:[#allocation5 + $0x10] sm:$0xff]
    %v832 = vld [vmem:[#allocation5 + $0x18] sm:$0xff]
    %v833 = vld [vmem:[#allocation5 + $0x20] sm:$0xff]
    %v834 = vld [vmem:[#allocation5 + $0x28] sm:$0xff]
    %v835 = vld [vmem:[#allocation5 + $0x30] sm:$0xff]
    %v836 = vld [vmem:[#allocation5 + $0x38] sm:$0xff]
    %v837 = vpack.c.bf16 %v829, %v829
    %v838 = vpack.c.bf16 %v830, %v830
    %v839 = vpack.c.bf16 %v831, %v831
    %v840 = vpack.c.bf16 %v832, %v832
    %v841 = vpack.c.bf16 %v833, %v833
    %v842 = vpack.c.bf16 %v834, %v834
    %v843 = vpack.c.bf16 %v835, %v835
    %v844 = vpack.c.bf16 %v836, %v836
    %v845 = vld [vmem:[#allocation8] sm:$0xff]
    %v846 = vld [vmem:[#allocation8 + $0x8] sm:$0xff]
    %v847 = vld [vmem:[#allocation8 + $0x10] sm:$0xff]
    %v848 = vld [vmem:[#allocation8 + $0x18] sm:$0xff]
    %v849 = vld [vmem:[#allocation8 + $0x20] sm:$0xff]
    %v850 = vld [vmem:[#allocation8 + $0x28] sm:$0xff]
    %v851 = vld [vmem:[#allocation8 + $0x30] sm:$0xff]
    %v852 = vld [vmem:[#allocation8 + $0x38] sm:$0xff]
    %v853 = vld [vmem:[#allocation8 + $0x40] sm:$0xff]
    %v854 = vld [vmem:[#allocation8 + $0x48] sm:$0xff]
    %v855 = vld [vmem:[#allocation8 + $0x50] sm:$0xff]
    %v856 = vld [vmem:[#allocation8 + $0x58] sm:$0xff]
    %v857 = vld [vmem:[#allocation8 + $0x60] sm:$0xff]
    %v858 = vld [vmem:[#allocation8 + $0x68] sm:$0xff]
    %v859 = vld [vmem:[#allocation8 + $0x70] sm:$0xff]
    %v860 = vld [vmem:[#allocation8 + $0x78] sm:$0xff]
    %v861 = vld [vmem:[#allocation8 + $0x80] sm:$0xff]
    %v862 = vld [vmem:[#allocation8 + $0x88] sm:$0xff]
    %v863 = vld [vmem:[#allocation8 + $0x90] sm:$0xff]
    %v864 = vld [vmem:[#allocation8 + $0x98] sm:$0xff]
    %v865 = vld [vmem:[#allocation8 + $0xa0] sm:$0xff]
    %v866 = vld [vmem:[#allocation8 + $0xa8] sm:$0xff]
    %v867 = vld [vmem:[#allocation8 + $0xb0] sm:$0xff]
    %v868 = vld [vmem:[#allocation8 + $0xb8] sm:$0xff]
    %v869 = vld [vmem:[#allocation8 + $0xc0] sm:$0xff]
    %v870 = vld [vmem:[#allocation8 + $0xc8] sm:$0xff]
    %v871 = vld [vmem:[#allocation8 + $0xd0] sm:$0xff]
    %v872 = vld [vmem:[#allocation8 + $0xd8] sm:$0xff]
    %v873 = vld [vmem:[#allocation8 + $0xe0] sm:$0xff]
    %v874 = vld [vmem:[#allocation8 + $0xe8] sm:$0xff]
    %v875 = vld [vmem:[#allocation8 + $0xf0] sm:$0xff]
    %v876 = vld [vmem:[#allocation8 + $0xf8] sm:$0xff]
    %v877 = vld [vmem:[#allocation8 + $0x100] sm:$0xff]
    %v878 = vld [vmem:[#allocation8 + $0x108] sm:$0xff]
    %v879 = vld [vmem:[#allocation8 + $0x110] sm:$0xff]
    %v880 = vld [vmem:[#allocation8 + $0x118] sm:$0xff]
    %v881 = vld [vmem:[#allocation8 + $0x120] sm:$0xff]
    %v882 = vld [vmem:[#allocation8 + $0x128] sm:$0xff]
    %v883 = vld [vmem:[#allocation8 + $0x130] sm:$0xff]
    %v884 = vld [vmem:[#allocation8 + $0x138] sm:$0xff]
    %v885 = vld [vmem:[#allocation8 + $0x140] sm:$0xff]
    %v886 = vld [vmem:[#allocation8 + $0x148] sm:$0xff]
    %v887 = vld [vmem:[#allocation8 + $0x150] sm:$0xff]
    %v888 = vld [vmem:[#allocation8 + $0x158] sm:$0xff]
    %v889 = vld [vmem:[#allocation8 + $0x160] sm:$0xff]
    %v890 = vld [vmem:[#allocation8 + $0x168] sm:$0xff]
    %v891 = vld [vmem:[#allocation8 + $0x170] sm:$0xff]
    %v892 = vld [vmem:[#allocation8 + $0x178] sm:$0xff]
    %v893 = vld [vmem:[#allocation8 + $0x180] sm:$0xff]
    %v894 = vld [vmem:[#allocation8 + $0x188] sm:$0xff]
    %v895 = vld [vmem:[#allocation8 + $0x190] sm:$0xff]
    %v896 = vld [vmem:[#allocation8 + $0x198] sm:$0xff]
    %v897 = vld [vmem:[#allocation8 + $0x1a0] sm:$0xff]
    %v898 = vld [vmem:[#allocation8 + $0x1a8] sm:$0xff]
    %v899 = vld [vmem:[#allocation8 + $0x1b0] sm:$0xff]
    %v900 = vld [vmem:[#allocation8 + $0x1b8] sm:$0xff]
    %v901 = vld [vmem:[#allocation8 + $0x1c0] sm:$0xff]
    %v902 = vld [vmem:[#allocation8 + $0x1c8] sm:$0xff]
    %v903 = vld [vmem:[#allocation8 + $0x1d0] sm:$0xff]
    %v904 = vld [vmem:[#allocation8 + $0x1d8] sm:$0xff]
    %v905 = vld [vmem:[#allocation8 + $0x1e0] sm:$0xff]
    %v906 = vld [vmem:[#allocation8 + $0x1e8] sm:$0xff]
    %v907 = vld [vmem:[#allocation8 + $0x1f0] sm:$0xff]
    %v908 = vld [vmem:[#allocation8 + $0x1f8] sm:$0xff]
    %v909 = vld [vmem:[#allocation8 + $0x200] sm:$0xff]
    %v910 = vld [vmem:[#allocation8 + $0x208] sm:$0xff]
    %v911 = vld [vmem:[#allocation8 + $0x210] sm:$0xff]
    %v912 = vld [vmem:[#allocation8 + $0x218] sm:$0xff]
    %v913 = vld [vmem:[#allocation8 + $0x220] sm:$0xff]
    %v914 = vld [vmem:[#allocation8 + $0x228] sm:$0xff]
    %v915 = vld [vmem:[#allocation8 + $0x230] sm:$0xff]
    %v916 = vld [vmem:[#allocation8 + $0x238] sm:$0xff]
    %v917 = vld [vmem:[#allocation8 + $0x240] sm:$0xff]
    %v918 = vld [vmem:[#allocation8 + $0x248] sm:$0xff]
    %v919 = vld [vmem:[#allocation8 + $0x250] sm:$0xff]
    %v920 = vld [vmem:[#allocation8 + $0x258] sm:$0xff]
    %v921 = vld [vmem:[#allocation8 + $0x260] sm:$0xff]
    %v922 = vld [vmem:[#allocation8 + $0x268] sm:$0xff]
    %v923 = vld [vmem:[#allocation8 + $0x270] sm:$0xff]
    %v924 = vld [vmem:[#allocation8 + $0x278] sm:$0xff]
    %v925 = vld [vmem:[#allocation8 + $0x280] sm:$0xff]
    %v926 = vld [vmem:[#allocation8 + $0x288] sm:$0xff]
    %v927 = vld [vmem:[#allocation8 + $0x290] sm:$0xff]
    %v928 = vld [vmem:[#allocation8 + $0x298] sm:$0xff]
    %v929 = vld [vmem:[#allocation8 + $0x2a0] sm:$0xff]
    %v930 = vld [vmem:[#allocation8 + $0x2a8] sm:$0xff]
    %v931 = vld [vmem:[#allocation8 + $0x2b0] sm:$0xff]
    %v932 = vld [vmem:[#allocation8 + $0x2b8] sm:$0xff]
    %v933 = vld [vmem:[#allocation8 + $0x2c0] sm:$0xff]
    %v934 = vld [vmem:[#allocation8 + $0x2c8] sm:$0xff]
    %v935 = vld [vmem:[#allocation8 + $0x2d0] sm:$0xff]
    %v936 = vld [vmem:[#allocation8 + $0x2d8] sm:$0xff]
    %v937 = vld [vmem:[#allocation8 + $0x2e0] sm:$0xff]
    %v938 = vld [vmem:[#allocation8 + $0x2e8] sm:$0xff]
    %v939 = vld [vmem:[#allocation8 + $0x2f0] sm:$0xff]
    %v940 = vld [vmem:[#allocation8 + $0x2f8] sm:$0xff]
    %v941 = vld [vmem:[#allocation8 + $0x300] sm:$0xff]
    %v942 = vld [vmem:[#allocation8 + $0x308] sm:$0xff]
    %v943 = vld [vmem:[#allocation8 + $0x310] sm:$0xff]
    %v944 = vld [vmem:[#allocation8 + $0x318] sm:$0xff]
    %v945 = vld [vmem:[#allocation8 + $0x320] sm:$0xff]
    %v946 = vld [vmem:[#allocation8 + $0x328] sm:$0xff]
    %v947 = vld [vmem:[#allocation8 + $0x330] sm:$0xff]
    %v948 = vld [vmem:[#allocation8 + $0x338] sm:$0xff]
    %v949 = vld [vmem:[#allocation8 + $0x340] sm:$0xff]
    %v950 = vld [vmem:[#allocation8 + $0x348] sm:$0xff]
    %v951 = vld [vmem:[#allocation8 + $0x350] sm:$0xff]
    %v952 = vld [vmem:[#allocation8 + $0x358] sm:$0xff]
    %v953 = vld [vmem:[#allocation8 + $0x360] sm:$0xff]
    %v954 = vld [vmem:[#allocation8 + $0x368] sm:$0xff]
    %v955 = vld [vmem:[#allocation8 + $0x370] sm:$0xff]
    %v956 = vld [vmem:[#allocation8 + $0x378] sm:$0xff]
    %v957 = vld [vmem:[#allocation8 + $0x380] sm:$0xff]
    %v958 = vld [vmem:[#allocation8 + $0x388] sm:$0xff]
    %v959 = vld [vmem:[#allocation8 + $0x390] sm:$0xff]
    %v960 = vld [vmem:[#allocation8 + $0x398] sm:$0xff]
    %v961 = vld [vmem:[#allocation8 + $0x3a0] sm:$0xff]
    %v962 = vld [vmem:[#allocation8 + $0x3a8] sm:$0xff]
    %v963 = vld [vmem:[#allocation8 + $0x3b0] sm:$0xff]
    %v964 = vld [vmem:[#allocation8 + $0x3b8] sm:$0xff]
    %v965 = vld [vmem:[#allocation8 + $0x3c0] sm:$0xff]
    %v966 = vld [vmem:[#allocation8 + $0x3c8] sm:$0xff]
    %v967 = vld [vmem:[#allocation8 + $0x3d0] sm:$0xff]
    %v968 = vld [vmem:[#allocation8 + $0x3d8] sm:$0xff]
    %v969 = vld [vmem:[#allocation8 + $0x3e0] sm:$0xff]
    %v970 = vld [vmem:[#allocation8 + $0x3e8] sm:$0xff]
    %v971 = vld [vmem:[#allocation8 + $0x3f0] sm:$0xff]
    %v972 = vld [vmem:[#allocation8 + $0x3f8] sm:$0xff]
    %v973 = vld [vmem:[#allocation8 + $0x400] sm:$0xff]
    %v974 = vld [vmem:[#allocation8 + $0x408] sm:$0xff]
    %v975 = vld [vmem:[#allocation8 + $0x410] sm:$0xff]
    %v976 = vld [vmem:[#allocation8 + $0x418] sm:$0xff]
    %v977 = vld [vmem:[#allocation8 + $0x420] sm:$0xff]
    %v978 = vld [vmem:[#allocation8 + $0x428] sm:$0xff]
    %v979 = vld [vmem:[#allocation8 + $0x430] sm:$0xff]
    %v980 = vld [vmem:[#allocation8 + $0x438] sm:$0xff]
    %v981 = vld [vmem:[#allocation8 + $0x440] sm:$0xff]
    %v982 = vld [vmem:[#allocation8 + $0x448] sm:$0xff]
    %v983 = vld [vmem:[#allocation8 + $0x450] sm:$0xff]
    %v984 = vld [vmem:[#allocation8 + $0x458] sm:$0xff]
    %v985 = vld [vmem:[#allocation8 + $0x460] sm:$0xff]
    %v986 = vld [vmem:[#allocation8 + $0x468] sm:$0xff]
    %v987 = vld [vmem:[#allocation8 + $0x470] sm:$0xff]
    %v988 = vld [vmem:[#allocation8 + $0x478] sm:$0xff]
    %v989 = vld [vmem:[#allocation8 + $0x480] sm:$0xff]
    %v990 = vld [vmem:[#allocation8 + $0x488] sm:$0xff]
    %v991 = vld [vmem:[#allocation8 + $0x490] sm:$0xff]
    %v992 = vld [vmem:[#allocation8 + $0x498] sm:$0xff]
    %v993 = vld [vmem:[#allocation8 + $0x4a0] sm:$0xff]
    %v994 = vld [vmem:[#allocation8 + $0x4a8] sm:$0xff]
    %v995 = vld [vmem:[#allocation8 + $0x4b0] sm:$0xff]
    %v996 = vld [vmem:[#allocation8 + $0x4b8] sm:$0xff]
    %v997 = vld [vmem:[#allocation8 + $0x4c0] sm:$0xff]
    %v998 = vld [vmem:[#allocation8 + $0x4c8] sm:$0xff]
    %v999 = vld [vmem:[#allocation8 + $0x4d0] sm:$0xff]
    %v1000 = vld [vmem:[#allocation8 + $0x4d8] sm:$0xff]
    %v1001 = vld [vmem:[#allocation8 + $0x4e0] sm:$0xff]
    %v1002 = vld [vmem:[#allocation8 + $0x4e8] sm:$0xff]
    %v1003 = vld [vmem:[#allocation8 + $0x4f0] sm:$0xff]
    %v1004 = vld [vmem:[#allocation8 + $0x4f8] sm:$0xff]
    %v1005 = vld [vmem:[#allocation8 + $0x500] sm:$0xff]
    %v1006 = vld [vmem:[#allocation8 + $0x508] sm:$0xff]
    %v1007 = vld [vmem:[#allocation8 + $0x510] sm:$0xff]
    %v1008 = vld [vmem:[#allocation8 + $0x518] sm:$0xff]
    %v1009 = vld [vmem:[#allocation8 + $0x520] sm:$0xff]
    %v1010 = vld [vmem:[#allocation8 + $0x528] sm:$0xff]
    %v1011 = vld [vmem:[#allocation8 + $0x530] sm:$0xff]
    %v1012 = vld [vmem:[#allocation8 + $0x538] sm:$0xff]
    %v1013 = vld [vmem:[#allocation8 + $0x540] sm:$0xff]
    %v1014 = vld [vmem:[#allocation8 + $0x548] sm:$0xff]
    %v1015 = vld [vmem:[#allocation8 + $0x550] sm:$0xff]
    %v1016 = vld [vmem:[#allocation8 + $0x558] sm:$0xff]
    %v1017 = vld [vmem:[#allocation8 + $0x560] sm:$0xff]
    %v1018 = vld [vmem:[#allocation8 + $0x568] sm:$0xff]
    %v1019 = vld [vmem:[#allocation8 + $0x570] sm:$0xff]
    %v1020 = vld [vmem:[#allocation8 + $0x578] sm:$0xff]
    %v1021 = vld [vmem:[#allocation8 + $0x580] sm:$0xff]
    %v1022 = vld [vmem:[#allocation8 + $0x588] sm:$0xff]
    %v1023 = vld [vmem:[#allocation8 + $0x590] sm:$0xff]
    %v1024 = vld [vmem:[#allocation8 + $0x598] sm:$0xff]
    %v1025 = vld [vmem:[#allocation8 + $0x5a0] sm:$0xff]
    %v1026 = vld [vmem:[#allocation8 + $0x5a8] sm:$0xff]
    %v1027 = vld [vmem:[#allocation8 + $0x5b0] sm:$0xff]
    %v1028 = vld [vmem:[#allocation8 + $0x5b8] sm:$0xff]
    %v1029 = vld [vmem:[#allocation8 + $0x5c0] sm:$0xff]
    %v1030 = vld [vmem:[#allocation8 + $0x5c8] sm:$0xff]
    %v1031 = vld [vmem:[#allocation8 + $0x5d0] sm:$0xff]
    %v1032 = vld [vmem:[#allocation8 + $0x5d8] sm:$0xff]
    %v1033 = vld [vmem:[#allocation8 + $0x5e0] sm:$0xff]
    %v1034 = vld [vmem:[#allocation8 + $0x5e8] sm:$0xff]
    %v1035 = vld [vmem:[#allocation8 + $0x5f0] sm:$0xff]
    %v1036 = vld [vmem:[#allocation8 + $0x5f8] sm:$0xff]
    %v1037 = vld [vmem:[#allocation8 + $0x600] sm:$0xff]
    %v1038 = vld [vmem:[#allocation8 + $0x608] sm:$0xff]
    %v1039 = vld [vmem:[#allocation8 + $0x610] sm:$0xff]
    %v1040 = vld [vmem:[#allocation8 + $0x618] sm:$0xff]
    %v1041 = vld [vmem:[#allocation8 + $0x620] sm:$0xff]
    %v1042 = vld [vmem:[#allocation8 + $0x628] sm:$0xff]
    %v1043 = vld [vmem:[#allocation8 + $0x630] sm:$0xff]
    %v1044 = vld [vmem:[#allocation8 + $0x638] sm:$0xff]
    %v1045 = vld [vmem:[#allocation8 + $0x640] sm:$0xff]
    %v1046 = vld [vmem:[#allocation8 + $0x648] sm:$0xff]
    %v1047 = vld [vmem:[#allocation8 + $0x650] sm:$0xff]
    %v1048 = vld [vmem:[#allocation8 + $0x658] sm:$0xff]
    %v1049 = vld [vmem:[#allocation8 + $0x660] sm:$0xff]
    %v1050 = vld [vmem:[#allocation8 + $0x668] sm:$0xff]
    %v1051 = vld [vmem:[#allocation8 + $0x670] sm:$0xff]
    %v1052 = vld [vmem:[#allocation8 + $0x678] sm:$0xff]
    %v1053 = vld [vmem:[#allocation8 + $0x680] sm:$0xff]
    %v1054 = vld [vmem:[#allocation8 + $0x688] sm:$0xff]
    %v1055 = vld [vmem:[#allocation8 + $0x690] sm:$0xff]
    %v1056 = vld [vmem:[#allocation8 + $0x698] sm:$0xff]
    %v1057 = vld [vmem:[#allocation8 + $0x6a0] sm:$0xff]
    %v1058 = vld [vmem:[#allocation8 + $0x6a8] sm:$0xff]
    %v1059 = vld [vmem:[#allocation8 + $0x6b0] sm:$0xff]
    %v1060 = vld [vmem:[#allocation8 + $0x6b8] sm:$0xff]
    %v1061 = vld [vmem:[#allocation8 + $0x6c0] sm:$0xff]
    %v1062 = vld [vmem:[#allocation8 + $0x6c8] sm:$0xff]
    %v1063 = vld [vmem:[#allocation8 + $0x6d0] sm:$0xff]
    %v1064 = vld [vmem:[#allocation8 + $0x6d8] sm:$0xff]
    %v1065 = vld [vmem:[#allocation8 + $0x6e0] sm:$0xff]
    %v1066 = vld [vmem:[#allocation8 + $0x6e8] sm:$0xff]
    %v1067 = vld [vmem:[#allocation8 + $0x6f0] sm:$0xff]
    %v1068 = vld [vmem:[#allocation8 + $0x6f8] sm:$0xff]
    %v1069 = vld [vmem:[#allocation8 + $0x700] sm:$0xff]
    %v1070 = vld [vmem:[#allocation8 + $0x708] sm:$0xff]
    %v1071 = vld [vmem:[#allocation8 + $0x710] sm:$0xff]
    %v1072 = vld [vmem:[#allocation8 + $0x718] sm:$0xff]
    %v1073 = vld [vmem:[#allocation8 + $0x720] sm:$0xff]
    %v1074 = vld [vmem:[#allocation8 + $0x728] sm:$0xff]
    %v1075 = vld [vmem:[#allocation8 + $0x730] sm:$0xff]
    %v1076 = vld [vmem:[#allocation8 + $0x738] sm:$0xff]
    %v1077 = vld [vmem:[#allocation8 + $0x740] sm:$0xff]
    %v1078 = vld [vmem:[#allocation8 + $0x748] sm:$0xff]
    %v1079 = vld [vmem:[#allocation8 + $0x750] sm:$0xff]
    %v1080 = vld [vmem:[#allocation8 + $0x758] sm:$0xff]
    %v1081 = vld [vmem:[#allocation8 + $0x760] sm:$0xff]
    %v1082 = vld [vmem:[#allocation8 + $0x768] sm:$0xff]
    %v1083 = vld [vmem:[#allocation8 + $0x770] sm:$0xff]
    %v1084 = vld [vmem:[#allocation8 + $0x778] sm:$0xff]
    %v1085 = vld [vmem:[#allocation8 + $0x780] sm:$0xff]
    %v1086 = vld [vmem:[#allocation8 + $0x788] sm:$0xff]
    %v1087 = vld [vmem:[#allocation8 + $0x790] sm:$0xff]
    %v1088 = vld [vmem:[#allocation8 + $0x798] sm:$0xff]
    %v1089 = vld [vmem:[#allocation8 + $0x7a0] sm:$0xff]
    %v1090 = vld [vmem:[#allocation8 + $0x7a8] sm:$0xff]
    %v1091 = vld [vmem:[#allocation8 + $0x7b0] sm:$0xff]
    %v1092 = vld [vmem:[#allocation8 + $0x7b8] sm:$0xff]
    %v1093 = vld [vmem:[#allocation8 + $0x7c0] sm:$0xff]
    %v1094 = vld [vmem:[#allocation8 + $0x7c8] sm:$0xff]
    %v1095 = vld [vmem:[#allocation8 + $0x7d0] sm:$0xff]
    %v1096 = vld [vmem:[#allocation8 + $0x7d8] sm:$0xff]
    %v1097 = vld [vmem:[#allocation8 + $0x7e0] sm:$0xff]
    %v1098 = vld [vmem:[#allocation8 + $0x7e8] sm:$0xff]
    %v1099 = vld [vmem:[#allocation8 + $0x7f0] sm:$0xff]
    %v1100 = vld [vmem:[#allocation8 + $0x7f8] sm:$0xff]
    %s1101 = scalar_lea.vmem %s3, 3
    %v1102 = vld [vmem:[%s1101] ss:$8 sm:$0xf]
    %v1104 = vperm.slane %v1102, 0
    %v1105 = vperm.slane %v1102, 1
    %v1106 = vperm.slane %v1102, 2
    %v1107 = vperm.slane %v1102, 3
    %v1368 = vunpack.c.l.b16 %v845
    %v1369 = vunpack.c.h.b16 %v845
    %v1370 = vunpack.c.l.b16 %v846
    %v1371 = vunpack.c.h.b16 %v846
    %v1372 = vunpack.c.l.b16 %v847
    %v1373 = vunpack.c.h.b16 %v847
    %v1374 = vunpack.c.l.b16 %v848
    %v1375 = vunpack.c.h.b16 %v848
    %v1376 = vunpack.c.l.b16 %v849
    %v1377 = vunpack.c.h.b16 %v849
    %v1378 = vunpack.c.l.b16 %v850
    %v1379 = vunpack.c.h.b16 %v850
    %v1380 = vunpack.c.l.b16 %v851
    %v1381 = vunpack.c.h.b16 %v851
    %v1382 = vunpack.c.l.b16 %v852
    %v1383 = vunpack.c.h.b16 %v852
    %v1384 = vunpack.c.l.b16 %v853
    %v1385 = vunpack.c.h.b16 %v853
    %v1386 = vunpack.c.l.b16 %v854
    %v1387 = vunpack.c.h.b16 %v854
    %v1388 = vunpack.c.l.b16 %v855
    %v1389 = vunpack.c.h.b16 %v855
    %v1390 = vunpack.c.l.b16 %v856
    %v1391 = vunpack.c.h.b16 %v856
    %v1392 = vunpack.c.l.b16 %v857
    %v1393 = vunpack.c.h.b16 %v857
    %v1394 = vunpack.c.l.b16 %v858
    %v1395 = vunpack.c.h.b16 %v858
    %v1396 = vunpack.c.l.b16 %v859
    %v1397 = vunpack.c.h.b16 %v859
    %v1398 = vunpack.c.l.b16 %v860
    %v1399 = vunpack.c.h.b16 %v860
    %v1400 = vunpack.c.l.b16 %v861
    %v1401 = vunpack.c.h.b16 %v861
    %v1402 = vunpack.c.l.b16 %v862
    %v1403 = vunpack.c.h.b16 %v862
    %v1404 = vunpack.c.l.b16 %v863
    %v1405 = vunpack.c.h.b16 %v863
    %v1406 = vunpack.c.l.b16 %v864
    %v1407 = vunpack.c.h.b16 %v864
    %v1408 = vunpack.c.l.b16 %v865
    %v1409 = vunpack.c.h.b16 %v865
    %v1410 = vunpack.c.l.b16 %v866
    %v1411 = vunpack.c.h.b16 %v866
    %v1412 = vunpack.c.l.b16 %v867
    %v1413 = vunpack.c.h.b16 %v867
    %v1414 = vunpack.c.l.b16 %v868
    %v1415 = vunpack.c.h.b16 %v868
    %v1416 = vunpack.c.l.b16 %v869
    %v1417 = vunpack.c.h.b16 %v869
    %v1418 = vunpack.c.l.b16 %v870
    %v1419 = vunpack.c.h.b16 %v870
    %v1420 = vunpack.c.l.b16 %v871
    %v1421 = vunpack.c.h.b16 %v871
    %v1422 = vunpack.c.l.b16 %v872
    %v1423 = vunpack.c.h.b16 %v872
    %v1424 = vunpack.c.l.b16 %v873
    %v1425 = vunpack.c.h.b16 %v873
    %v1426 = vunpack.c.l.b16 %v874
    %v1427 = vunpack.c.h.b16 %v874
    %v1428 = vunpack.c.l.b16 %v875
    %v1429 = vunpack.c.h.b16 %v875
    %v1430 = vunpack.c.l.b16 %v876
    %v1431 = vunpack.c.h.b16 %v876
    %v1432 = vunpack.c.l.b16 %v877
    %v1433 = vunpack.c.h.b16 %v877
    %v1434 = vunpack.c.l.b16 %v878
    %v1435 = vunpack.c.h.b16 %v878
    %v1436 = vunpack.c.l.b16 %v879
    %v1437 = vunpack.c.h.b16 %v879
    %v1438 = vunpack.c.l.b16 %v880
    %v1439 = vunpack.c.h.b16 %v880
    %v1440 = vunpack.c.l.b16 %v881
    %v1441 = vunpack.c.h.b16 %v881
    %v1442 = vunpack.c.l.b16 %v882
    %v1443 = vunpack.c.h.b16 %v882
    %v1444 = vunpack.c.l.b16 %v883
    %v1445 = vunpack.c.h.b16 %v883
    %v1446 = vunpack.c.l.b16 %v884
    %v1447 = vunpack.c.h.b16 %v884
    %v1448 = vunpack.c.l.b16 %v885
    %v1449 = vunpack.c.h.b16 %v885
    %v1450 = vunpack.c.l.b16 %v886
    %v1451 = vunpack.c.h.b16 %v886
    %v1452 = vunpack.c.l.b16 %v887
    %v1453 = vunpack.c.h.b16 %v887
    %v1454 = vunpack.c.l.b16 %v888
    %v1455 = vunpack.c.h.b16 %v888
    %v1456 = vunpack.c.l.b16 %v889
    %v1457 = vunpack.c.h.b16 %v889
    %v1458 = vunpack.c.l.b16 %v890
    %v1459 = vunpack.c.h.b16 %v890
    %v1460 = vunpack.c.l.b16 %v891
    %v1461 = vunpack.c.h.b16 %v891
    %v1462 = vunpack.c.l.b16 %v892
    %v1463 = vunpack.c.h.b16 %v892
    %v1464 = vunpack.c.l.b16 %v893
    %v1465 = vunpack.c.h.b16 %v893
    %v1466 = vunpack.c.l.b16 %v894
    %v1467 = vunpack.c.h.b16 %v894
    %v1468 = vunpack.c.l.b16 %v895
    %v1469 = vunpack.c.h.b16 %v895
    %v1470 = vunpack.c.l.b16 %v896
    %v1471 = vunpack.c.h.b16 %v896
    %v1472 = vunpack.c.l.b16 %v897
    %v1473 = vunpack.c.h.b16 %v897
    %v1474 = vunpack.c.l.b16 %v898
    %v1475 = vunpack.c.h.b16 %v898
    %v1476 = vunpack.c.l.b16 %v899
    %v1477 = vunpack.c.h.b16 %v899
    %v1478 = vunpack.c.l.b16 %v900
    %v1479 = vunpack.c.h.b16 %v900
    %v1480 = vunpack.c.l.b16 %v901
    %v1481 = vunpack.c.h.b16 %v901
    %v1482 = vunpack.c.l.b16 %v902
    %v1483 = vunpack.c.h.b16 %v902
    %v1484 = vunpack.c.l.b16 %v903
    %v1485 = vunpack.c.h.b16 %v903
    %v1486 = vunpack.c.l.b16 %v904
    %v1487 = vunpack.c.h.b16 %v904
    %v1488 = vunpack.c.l.b16 %v905
    %v1489 = vunpack.c.h.b16 %v905
    %v1490 = vunpack.c.l.b16 %v906
    %v1491 = vunpack.c.h.b16 %v906
    %v1492 = vunpack.c.l.b16 %v907
    %v1493 = vunpack.c.h.b16 %v907
    %v1494 = vunpack.c.l.b16 %v908
    %v1495 = vunpack.c.h.b16 %v908
    %v1496 = vunpack.c.l.b16 %v909
    %v1497 = vunpack.c.h.b16 %v909
    %v1498 = vunpack.c.l.b16 %v910
    %v1499 = vunpack.c.h.b16 %v910
    %v1500 = vunpack.c.l.b16 %v911
    %v1501 = vunpack.c.h.b16 %v911
    %v1502 = vunpack.c.l.b16 %v912
    %v1503 = vunpack.c.h.b16 %v912
    %v1504 = vunpack.c.l.b16 %v913
    %v1505 = vunpack.c.h.b16 %v913
    %v1506 = vunpack.c.l.b16 %v914
    %v1507 = vunpack.c.h.b16 %v914
    %v1508 = vunpack.c.l.b16 %v915
    %v1509 = vunpack.c.h.b16 %v915
    %v1510 = vunpack.c.l.b16 %v916
    %v1511 = vunpack.c.h.b16 %v916
    %v1512 = vunpack.c.l.b16 %v917
    %v1513 = vunpack.c.h.b16 %v917
    %v1514 = vunpack.c.l.b16 %v918
    %v1515 = vunpack.c.h.b16 %v918
    %v1516 = vunpack.c.l.b16 %v919
    %v1517 = vunpack.c.h.b16 %v919
    %v1518 = vunpack.c.l.b16 %v920
    %v1519 = vunpack.c.h.b16 %v920
    %v1520 = vunpack.c.l.b16 %v921
    %v1521 = vunpack.c.h.b16 %v921
    %v1522 = vunpack.c.l.b16 %v922
    %v1523 = vunpack.c.h.b16 %v922
    %v1524 = vunpack.c.l.b16 %v923
    %v1525 = vunpack.c.h.b16 %v923
    %v1526 = vunpack.c.l.b16 %v924
    %v1527 = vunpack.c.h.b16 %v924
    %v1528 = vunpack.c.l.b16 %v925
    %v1529 = vunpack.c.h.b16 %v925
    %v1530 = vunpack.c.l.b16 %v926
    %v1531 = vunpack.c.h.b16 %v926
    %v1532 = vunpack.c.l.b16 %v927
    %v1533 = vunpack.c.h.b16 %v927
    %v1534 = vunpack.c.l.b16 %v928
    %v1535 = vunpack.c.h.b16 %v928
    %v1536 = vunpack.c.l.b16 %v929
    %v1537 = vunpack.c.h.b16 %v929
    %v1538 = vunpack.c.l.b16 %v930
    %v1539 = vunpack.c.h.b16 %v930
    %v1540 = vunpack.c.l.b16 %v931
    %v1541 = vunpack.c.h.b16 %v931
    %v1542 = vunpack.c.l.b16 %v932
    %v1543 = vunpack.c.h.b16 %v932
    %v1544 = vunpack.c.l.b16 %v933
    %v1545 = vunpack.c.h.b16 %v933
    %v1546 = vunpack.c.l.b16 %v934
    %v1547 = vunpack.c.h.b16 %v934
    %v1548 = vunpack.c.l.b16 %v935
    %v1549 = vunpack.c.h.b16 %v935
    %v1550 = vunpack.c.l.b16 %v936
    %v1551 = vunpack.c.h.b16 %v936
    %v1552 = vunpack.c.l.b16 %v937
    %v1553 = vunpack.c.h.b16 %v937
    %v1554 = vunpack.c.l.b16 %v938
    %v1555 = vunpack.c.h.b16 %v938
    %v1556 = vunpack.c.l.b16 %v939
    %v1557 = vunpack.c.h.b16 %v939
    %v1558 = vunpack.c.l.b16 %v940
    %v1559 = vunpack.c.h.b16 %v940
    %v1560 = vunpack.c.l.b16 %v941
    %v1561 = vunpack.c.h.b16 %v941
    %v1562 = vunpack.c.l.b16 %v942
    %v1563 = vunpack.c.h.b16 %v942
    %v1564 = vunpack.c.l.b16 %v943
    %v1565 = vunpack.c.h.b16 %v943
    %v1566 = vunpack.c.l.b16 %v944
    %v1567 = vunpack.c.h.b16 %v944
    %v1568 = vunpack.c.l.b16 %v945
    %v1569 = vunpack.c.h.b16 %v945
    %v1570 = vunpack.c.l.b16 %v946
    %v1571 = vunpack.c.h.b16 %v946
    %v1572 = vunpack.c.l.b16 %v947
    %v1573 = vunpack.c.h.b16 %v947
    %v1574 = vunpack.c.l.b16 %v948
    %v1575 = vunpack.c.h.b16 %v948
    %v1576 = vunpack.c.l.b16 %v949
    %v1577 = vunpack.c.h.b16 %v949
    %v1578 = vunpack.c.l.b16 %v950
    %v1579 = vunpack.c.h.b16 %v950
    %v1580 = vunpack.c.l.b16 %v951
    %v1581 = vunpack.c.h.b16 %v951
    %v1582 = vunpack.c.l.b16 %v952
    %v1583 = vunpack.c.h.b16 %v952
    %v1584 = vunpack.c.l.b16 %v953
    %v1585 = vunpack.c.h.b16 %v953
    %v1586 = vunpack.c.l.b16 %v954
    %v1587 = vunpack.c.h.b16 %v954
    %v1588 = vunpack.c.l.b16 %v955
    %v1589 = vunpack.c.h.b16 %v955
    %v1590 = vunpack.c.l.b16 %v956
    %v1591 = vunpack.c.h.b16 %v956
    %v1592 = vunpack.c.l.b16 %v957
    %v1593 = vunpack.c.h.b16 %v957
    %v1594 = vunpack.c.l.b16 %v958
    %v1595 = vunpack.c.h.b16 %v958
    %v1596 = vunpack.c.l.b16 %v959
    %v1597 = vunpack.c.h.b16 %v959
    %v1598 = vunpack.c.l.b16 %v960
    %v1599 = vunpack.c.h.b16 %v960
    %v1600 = vunpack.c.l.b16 %v961
    %v1601 = vunpack.c.h.b16 %v961
    %v1602 = vunpack.c.l.b16 %v962
    %v1603 = vunpack.c.h.b16 %v962
    %v1604 = vunpack.c.l.b16 %v963
    %v1605 = vunpack.c.h.b16 %v963
    %v1606 = vunpack.c.l.b16 %v964
    %v1607 = vunpack.c.h.b16 %v964
    %v1608 = vunpack.c.l.b16 %v965
    %v1609 = vunpack.c.h.b16 %v965
    %v1610 = vunpack.c.l.b16 %v966
    %v1611 = vunpack.c.h.b16 %v966
    %v1612 = vunpack.c.l.b16 %v967
    %v1613 = vunpack.c.h.b16 %v967
    %v1614 = vunpack.c.l.b16 %v968
    %v1615 = vunpack.c.h.b16 %v968
    %v1616 = vunpack.c.l.b16 %v969
    %v1617 = vunpack.c.h.b16 %v969
    %v1618 = vunpack.c.l.b16 %v970
    %v1619 = vunpack.c.h.b16 %v970
    %v1620 = vunpack.c.l.b16 %v971
    %v1621 = vunpack.c.h.b16 %v971
    %v1622 = vunpack.c.l.b16 %v972
    %v1623 = vunpack.c.h.b16 %v972
    %v1624 = vunpack.c.l.b16 %v973
    %v1625 = vunpack.c.h.b16 %v973
    %v1626 = vunpack.c.l.b16 %v974
    %v1627 = vunpack.c.h.b16 %v974
    %v1628 = vunpack.c.l.b16 %v975
    %v1629 = vunpack.c.h.b16 %v975
    %v1630 = vunpack.c.l.b16 %v976
    %v1631 = vunpack.c.h.b16 %v976
    %v1632 = vunpack.c.l.b16 %v977
    %v1633 = vunpack.c.h.b16 %v977
    %v1634 = vunpack.c.l.b16 %v978
    %v1635 = vunpack.c.h.b16 %v978
    %v1636 = vunpack.c.l.b16 %v979
    %v1637 = vunpack.c.h.b16 %v979
    %v1638 = vunpack.c.l.b16 %v980
    %v1639 = vunpack.c.h.b16 %v980
    %v1640 = vunpack.c.l.b16 %v981
    %v1641 = vunpack.c.h.b16 %v981
    %v1642 = vunpack.c.l.b16 %v982
    %v1643 = vunpack.c.h.b16 %v982
    %v1644 = vunpack.c.l.b16 %v983
    %v1645 = vunpack.c.h.b16 %v983
    %v1646 = vunpack.c.l.b16 %v984
    %v1647 = vunpack.c.h.b16 %v984
    %v1648 = vunpack.c.l.b16 %v985
    %v1649 = vunpack.c.h.b16 %v985
    %v1650 = vunpack.c.l.b16 %v986
    %v1651 = vunpack.c.h.b16 %v986
    %v1652 = vunpack.c.l.b16 %v987
    %v1653 = vunpack.c.h.b16 %v987
    %v1654 = vunpack.c.l.b16 %v988
    %v1655 = vunpack.c.h.b16 %v988
    %v1656 = vunpack.c.l.b16 %v989
    %v1657 = vunpack.c.h.b16 %v989
    %v1658 = vunpack.c.l.b16 %v990
    %v1659 = vunpack.c.h.b16 %v990
    %v1660 = vunpack.c.l.b16 %v991
    %v1661 = vunpack.c.h.b16 %v991
    %v1662 = vunpack.c.l.b16 %v992
    %v1663 = vunpack.c.h.b16 %v992
    %v1664 = vunpack.c.l.b16 %v993
    %v1665 = vunpack.c.h.b16 %v993
    %v1666 = vunpack.c.l.b16 %v994
    %v1667 = vunpack.c.h.b16 %v994
    %v1668 = vunpack.c.l.b16 %v995
    %v1669 = vunpack.c.h.b16 %v995
    %v1670 = vunpack.c.l.b16 %v996
    %v1671 = vunpack.c.h.b16 %v996
    %v1672 = vunpack.c.l.b16 %v997
    %v1673 = vunpack.c.h.b16 %v997
    %v1674 = vunpack.c.l.b16 %v998
    %v1675 = vunpack.c.h.b16 %v998
    %v1676 = vunpack.c.l.b16 %v999
    %v1677 = vunpack.c.h.b16 %v999
    %v1678 = vunpack.c.l.b16 %v1000
    %v1679 = vunpack.c.h.b16 %v1000
    %v1680 = vunpack.c.l.b16 %v1001
    %v1681 = vunpack.c.h.b16 %v1001
    %v1682 = vunpack.c.l.b16 %v1002
    %v1683 = vunpack.c.h.b16 %v1002
    %v1684 = vunpack.c.l.b16 %v1003
    %v1685 = vunpack.c.h.b16 %v1003
    %v1686 = vunpack.c.l.b16 %v1004
    %v1687 = vunpack.c.h.b16 %v1004
    %v1688 = vunpack.c.l.b16 %v1005
    %v1689 = vunpack.c.h.b16 %v1005
    %v1690 = vunpack.c.l.b16 %v1006
    %v1691 = vunpack.c.h.b16 %v1006
    %v1692 = vunpack.c.l.b16 %v1007
    %v1693 = vunpack.c.h.b16 %v1007
    %v1694 = vunpack.c.l.b16 %v1008
    %v1695 = vunpack.c.h.b16 %v1008
    %v1696 = vunpack.c.l.b16 %v1009
    %v1697 = vunpack.c.h.b16 %v1009
    %v1698 = vunpack.c.l.b16 %v1010
    %v1699 = vunpack.c.h.b16 %v1010
    %v1700 = vunpack.c.l.b16 %v1011
    %v1701 = vunpack.c.h.b16 %v1011
    %v1702 = vunpack.c.l.b16 %v1012
    %v1703 = vunpack.c.h.b16 %v1012
    %v1704 = vunpack.c.l.b16 %v1013
    %v1705 = vunpack.c.h.b16 %v1013
    %v1706 = vunpack.c.l.b16 %v1014
    %v1707 = vunpack.c.h.b16 %v1014
    %v1708 = vunpack.c.l.b16 %v1015
    %v1709 = vunpack.c.h.b16 %v1015
    %v1710 = vunpack.c.l.b16 %v1016
    %v1711 = vunpack.c.h.b16 %v1016
    %v1712 = vunpack.c.l.b16 %v1017
    %v1713 = vunpack.c.h.b16 %v1017
    %v1714 = vunpack.c.l.b16 %v1018
    %v1715 = vunpack.c.h.b16 %v1018
    %v1716 = vunpack.c.l.b16 %v1019
    %v1717 = vunpack.c.h.b16 %v1019
    %v1718 = vunpack.c.l.b16 %v1020
    %v1719 = vunpack.c.h.b16 %v1020
    %v1720 = vunpack.c.l.b16 %v1021
    %v1721 = vunpack.c.h.b16 %v1021
    %v1722 = vunpack.c.l.b16 %v1022
    %v1723 = vunpack.c.h.b16 %v1022
    %v1724 = vunpack.c.l.b16 %v1023
    %v1725 = vunpack.c.h.b16 %v1023
    %v1726 = vunpack.c.l.b16 %v1024
    %v1727 = vunpack.c.h.b16 %v1024
    %v1728 = vunpack.c.l.b16 %v1025
    %v1729 = vunpack.c.h.b16 %v1025
    %v1730 = vunpack.c.l.b16 %v1026
    %v1731 = vunpack.c.h.b16 %v1026
    %v1732 = vunpack.c.l.b16 %v1027
    %v1733 = vunpack.c.h.b16 %v1027
    %v1734 = vunpack.c.l.b16 %v1028
    %v1735 = vunpack.c.h.b16 %v1028
    %v1736 = vunpack.c.l.b16 %v1029
    %v1737 = vunpack.c.h.b16 %v1029
    %v1738 = vunpack.c.l.b16 %v1030
    %v1739 = vunpack.c.h.b16 %v1030
    %v1740 = vunpack.c.l.b16 %v1031
    %v1741 = vunpack.c.h.b16 %v1031
    %v1742 = vunpack.c.l.b16 %v1032
    %v1743 = vunpack.c.h.b16 %v1032
    %v1744 = vunpack.c.l.b16 %v1033
    %v1745 = vunpack.c.h.b16 %v1033
    %v1746 = vunpack.c.l.b16 %v1034
    %v1747 = vunpack.c.h.b16 %v1034
    %v1748 = vunpack.c.l.b16 %v1035
    %v1749 = vunpack.c.h.b16 %v1035
    %v1750 = vunpack.c.l.b16 %v1036
    %v1751 = vunpack.c.h.b16 %v1036
    %v1752 = vunpack.c.l.b16 %v1037
    %v1753 = vunpack.c.h.b16 %v1037
    %v1754 = vunpack.c.l.b16 %v1038
    %v1755 = vunpack.c.h.b16 %v1038
    %v1756 = vunpack.c.l.b16 %v1039
    %v1757 = vunpack.c.h.b16 %v1039
    %v1758 = vunpack.c.l.b16 %v1040
    %v1759 = vunpack.c.h.b16 %v1040
    %v1760 = vunpack.c.l.b16 %v1041
    %v1761 = vunpack.c.h.b16 %v1041
    %v1762 = vunpack.c.l.b16 %v1042
    %v1763 = vunpack.c.h.b16 %v1042
    %v1764 = vunpack.c.l.b16 %v1043
    %v1765 = vunpack.c.h.b16 %v1043
    %v1766 = vunpack.c.l.b16 %v1044
    %v1767 = vunpack.c.h.b16 %v1044
    %v1768 = vunpack.c.l.b16 %v1045
    %v1769 = vunpack.c.h.b16 %v1045
    %v1770 = vunpack.c.l.b16 %v1046
    %v1771 = vunpack.c.h.b16 %v1046
    %v1772 = vunpack.c.l.b16 %v1047
    %v1773 = vunpack.c.h.b16 %v1047
    %v1774 = vunpack.c.l.b16 %v1048
    %v1775 = vunpack.c.h.b16 %v1048
    %v1776 = vunpack.c.l.b16 %v1049
    %v1777 = vunpack.c.h.b16 %v1049
    %v1778 = vunpack.c.l.b16 %v1050
    %v1779 = vunpack.c.h.b16 %v1050
    %v1780 = vunpack.c.l.b16 %v1051
    %v1781 = vunpack.c.h.b16 %v1051
    %v1782 = vunpack.c.l.b16 %v1052
    %v1783 = vunpack.c.h.b16 %v1052
    %v1784 = vunpack.c.l.b16 %v1053
    %v1785 = vunpack.c.h.b16 %v1053
    %v1786 = vunpack.c.l.b16 %v1054
    %v1787 = vunpack.c.h.b16 %v1054
    %v1788 = vunpack.c.l.b16 %v1055
    %v1789 = vunpack.c.h.b16 %v1055
    %v1790 = vunpack.c.l.b16 %v1056
    %v1791 = vunpack.c.h.b16 %v1056
    %v1792 = vunpack.c.l.b16 %v1057
    %v1793 = vunpack.c.h.b16 %v1057
    %v1794 = vunpack.c.l.b16 %v1058
    %v1795 = vunpack.c.h.b16 %v1058
    %v1796 = vunpack.c.l.b16 %v1059
    %v1797 = vunpack.c.h.b16 %v1059
    %v1798 = vunpack.c.l.b16 %v1060
    %v1799 = vunpack.c.h.b16 %v1060
    %v1800 = vunpack.c.l.b16 %v1061
    %v1801 = vunpack.c.h.b16 %v1061
    %v1802 = vunpack.c.l.b16 %v1062
    %v1803 = vunpack.c.h.b16 %v1062
    %v1804 = vunpack.c.l.b16 %v1063
    %v1805 = vunpack.c.h.b16 %v1063
    %v1806 = vunpack.c.l.b16 %v1064
    %v1807 = vunpack.c.h.b16 %v1064
    %v1808 = vunpack.c.l.b16 %v1065
    %v1809 = vunpack.c.h.b16 %v1065
    %v1810 = vunpack.c.l.b16 %v1066
    %v1811 = vunpack.c.h.b16 %v1066
    %v1812 = vunpack.c.l.b16 %v1067
    %v1813 = vunpack.c.h.b16 %v1067
    %v1814 = vunpack.c.l.b16 %v1068
    %v1815 = vunpack.c.h.b16 %v1068
    %v1816 = vunpack.c.l.b16 %v1069
    %v1817 = vunpack.c.h.b16 %v1069
    %v1818 = vunpack.c.l.b16 %v1070
    %v1819 = vunpack.c.h.b16 %v1070
    %v1820 = vunpack.c.l.b16 %v1071
    %v1821 = vunpack.c.h.b16 %v1071
    %v1822 = vunpack.c.l.b16 %v1072
    %v1823 = vunpack.c.h.b16 %v1072
    %v1824 = vunpack.c.l.b16 %v1073
    %v1825 = vunpack.c.h.b16 %v1073
    %v1826 = vunpack.c.l.b16 %v1074
    %v1827 = vunpack.c.h.b16 %v1074
    %v1828 = vunpack.c.l.b16 %v1075
    %v1829 = vunpack.c.h.b16 %v1075
    %v1830 = vunpack.c.l.b16 %v1076
    %v1831 = vunpack.c.h.b16 %v1076
    %v1832 = vunpack.c.l.b16 %v1077
    %v1833 = vunpack.c.h.b16 %v1077
    %v1834 = vunpack.c.l.b16 %v1078
    %v1835 = vunpack.c.h.b16 %v1078
    %v1836 = vunpack.c.l.b16 %v1079
    %v1837 = vunpack.c.h.b16 %v1079
    %v1838 = vunpack.c.l.b16 %v1080
    %v1839 = vunpack.c.h.b16 %v1080
    %v1840 = vunpack.c.l.b16 %v1081
    %v1841 = vunpack.c.h.b16 %v1081
    %v1842 = vunpack.c.l.b16 %v1082
    %v1843 = vunpack.c.h.b16 %v1082
    %v1844 = vunpack.c.l.b16 %v1083
    %v1845 = vunpack.c.h.b16 %v1083
    %v1846 = vunpack.c.l.b16 %v1084
    %v1847 = vunpack.c.h.b16 %v1084
    %v1848 = vunpack.c.l.b16 %v1085
    %v1849 = vunpack.c.h.b16 %v1085
    %v1850 = vunpack.c.l.b16 %v1086
    %v1851 = vunpack.c.h.b16 %v1086
    %v1852 = vunpack.c.l.b16 %v1087
    %v1853 = vunpack.c.h.b16 %v1087
    %v1854 = vunpack.c.l.b16 %v1088
    %v1855 = vunpack.c.h.b16 %v1088
    %v1856 = vunpack.c.l.b16 %v1089
    %v1857 = vunpack.c.h.b16 %v1089
    %v1858 = vunpack.c.l.b16 %v1090
    %v1859 = vunpack.c.h.b16 %v1090
    %v1860 = vunpack.c.l.b16 %v1091
    %v1861 = vunpack.c.h.b16 %v1091
    %v1862 = vunpack.c.l.b16 %v1092
    %v1863 = vunpack.c.h.b16 %v1092
    %v1864 = vunpack.c.l.b16 %v1093
    %v1865 = vunpack.c.h.b16 %v1093
    %v1866 = vunpack.c.l.b16 %v1094
    %v1867 = vunpack.c.h.b16 %v1094
    %v1868 = vunpack.c.l.b16 %v1095
    %v1869 = vunpack.c.h.b16 %v1095
    %v1870 = vunpack.c.l.b16 %v1096
    %v1871 = vunpack.c.h.b16 %v1096
    %v1872 = vunpack.c.l.b16 %v1097
    %v1873 = vunpack.c.h.b16 %v1097
    %v1874 = vunpack.c.l.b16 %v1098
    %v1875 = vunpack.c.h.b16 %v1098
    %v1876 = vunpack.c.l.b16 %v1099
    %v1877 = vunpack.c.h.b16 %v1099
    %v1878 = vunpack.c.l.b16 %v1100
    %v1879 = vunpack.c.h.b16 %v1100
    %v1880 = vpack.c.b16 %v1372, %v1368
    %v1881 = vpack.c.b16 %v1373, %v1369
    %v1882 = vpack.c.b16 %v1374, %v1370
    %v1883 = vpack.c.b16 %v1375, %v1371
    %v1884 = vpack.c.b16 %v1380, %v1376
    %v1885 = vpack.c.b16 %v1381, %v1377
    %v1886 = vpack.c.b16 %v1382, %v1378
    %v1887 = vpack.c.b16 %v1383, %v1379
    %v1888 = vpack.c.b16 %v1388, %v1384
    %v1889 = vpack.c.b16 %v1389, %v1385
    %v1890 = vpack.c.b16 %v1390, %v1386
    %v1891 = vpack.c.b16 %v1391, %v1387
    %v1892 = vpack.c.b16 %v1396, %v1392
    %v1893 = vpack.c.b16 %v1397, %v1393
    %v1894 = vpack.c.b16 %v1398, %v1394
    %v1895 = vpack.c.b16 %v1399, %v1395
    %v1896 = vpack.c.b16 %v1404, %v1400
    %v1897 = vpack.c.b16 %v1405, %v1401
    %v1898 = vpack.c.b16 %v1406, %v1402
    %v1899 = vpack.c.b16 %v1407, %v1403
    %v1900 = vpack.c.b16 %v1412, %v1408
    %v1901 = vpack.c.b16 %v1413, %v1409
    %v1902 = vpack.c.b16 %v1414, %v1410
    %v1903 = vpack.c.b16 %v1415, %v1411
    %v1904 = vpack.c.b16 %v1420, %v1416
    %v1905 = vpack.c.b16 %v1421, %v1417
    %v1906 = vpack.c.b16 %v1422, %v1418
    %v1907 = vpack.c.b16 %v1423, %v1419
    %v1908 = vpack.c.b16 %v1428, %v1424
    %v1909 = vpack.c.b16 %v1429, %v1425
    %v1910 = vpack.c.b16 %v1430, %v1426
    %v1911 = vpack.c.b16 %v1431, %v1427
    %v1912 = vpack.c.b16 %v1436, %v1432
    %v1913 = vpack.c.b16 %v1437, %v1433
    %v1914 = vpack.c.b16 %v1438, %v1434
    %v1915 = vpack.c.b16 %v1439, %v1435
    %v1916 = vpack.c.b16 %v1444, %v1440
    %v1917 = vpack.c.b16 %v1445, %v1441
    %v1918 = vpack.c.b16 %v1446, %v1442
    %v1919 = vpack.c.b16 %v1447, %v1443
    %v1920 = vpack.c.b16 %v1452, %v1448
    %v1921 = vpack.c.b16 %v1453, %v1449
    %v1922 = vpack.c.b16 %v1454, %v1450
    %v1923 = vpack.c.b16 %v1455, %v1451
    %v1924 = vpack.c.b16 %v1460, %v1456
    %v1925 = vpack.c.b16 %v1461, %v1457
    %v1926 = vpack.c.b16 %v1462, %v1458
    %v1927 = vpack.c.b16 %v1463, %v1459
    %v1928 = vpack.c.b16 %v1468, %v1464
    %v1929 = vpack.c.b16 %v1469, %v1465
    %v1930 = vpack.c.b16 %v1470, %v1466
    %v1931 = vpack.c.b16 %v1471, %v1467
    %v1932 = vpack.c.b16 %v1476, %v1472
    %v1933 = vpack.c.b16 %v1477, %v1473
    %v1934 = vpack.c.b16 %v1478, %v1474
    %v1935 = vpack.c.b16 %v1479, %v1475
    %v1936 = vpack.c.b16 %v1484, %v1480
    %v1937 = vpack.c.b16 %v1485, %v1481
    %v1938 = vpack.c.b16 %v1486, %v1482
    %v1939 = vpack.c.b16 %v1487, %v1483
    %v1940 = vpack.c.b16 %v1492, %v1488
    %v1941 = vpack.c.b16 %v1493, %v1489
    %v1942 = vpack.c.b16 %v1494, %v1490
    %v1943 = vpack.c.b16 %v1495, %v1491
    %v1944 = vpack.c.b16 %v1500, %v1496
    %v1945 = vpack.c.b16 %v1501, %v1497
    %v1946 = vpack.c.b16 %v1502, %v1498
    %v1947 = vpack.c.b16 %v1503, %v1499
    %v1948 = vpack.c.b16 %v1508, %v1504
    %v1949 = vpack.c.b16 %v1509, %v1505
    %v1950 = vpack.c.b16 %v1510, %v1506
    %v1951 = vpack.c.b16 %v1511, %v1507
    %v1952 = vpack.c.b16 %v1516, %v1512
    %v1953 = vpack.c.b16 %v1517, %v1513
    %v1954 = vpack.c.b16 %v1518, %v1514
    %v1955 = vpack.c.b16 %v1519, %v1515
    %v1956 = vpack.c.b16 %v1524, %v1520
    %v1957 = vpack.c.b16 %v1525, %v1521
    %v1958 = vpack.c.b16 %v1526, %v1522
    %v1959 = vpack.c.b16 %v1527, %v1523
    %v1960 = vpack.c.b16 %v1532, %v1528
    %v1961 = vpack.c.b16 %v1533, %v1529
    %v1962 = vpack.c.b16 %v1534, %v1530
    %v1963 = vpack.c.b16 %v1535, %v1531
    %v1964 = vpack.c.b16 %v1540, %v1536
    %v1965 = vpack.c.b16 %v1541, %v1537
    %v1966 = vpack.c.b16 %v1542, %v1538
    %v1967 = vpack.c.b16 %v1543, %v1539
    %v1968 = vpack.c.b16 %v1548, %v1544
    %v1969 = vpack.c.b16 %v1549, %v1545
    %v1970 = vpack.c.b16 %v1550, %v1546
    %v1971 = vpack.c.b16 %v1551, %v1547
    %v1972 = vpack.c.b16 %v1556, %v1552
    %v1973 = vpack.c.b16 %v1557, %v1553
    %v1974 = vpack.c.b16 %v1558, %v1554
    %v1975 = vpack.c.b16 %v1559, %v1555
    %v1976 = vpack.c.b16 %v1564, %v1560
    %v1977 = vpack.c.b16 %v1565, %v1561
    %v1978 = vpack.c.b16 %v1566, %v1562
    %v1979 = vpack.c.b16 %v1567, %v1563
    %v1980 = vpack.c.b16 %v1572, %v1568
    %v1981 = vpack.c.b16 %v1573, %v1569
    %v1982 = vpack.c.b16 %v1574, %v1570
    %v1983 = vpack.c.b16 %v1575, %v1571
    %v1984 = vpack.c.b16 %v1580, %v1576
    %v1985 = vpack.c.b16 %v1581, %v1577
    %v1986 = vpack.c.b16 %v1582, %v1578
    %v1987 = vpack.c.b16 %v1583, %v1579
    %v1988 = vpack.c.b16 %v1588, %v1584
    %v1989 = vpack.c.b16 %v1589, %v1585
    %v1990 = vpack.c.b16 %v1590, %v1586
    %v1991 = vpack.c.b16 %v1591, %v1587
    %v1992 = vpack.c.b16 %v1596, %v1592
    %v1993 = vpack.c.b16 %v1597, %v1593
    %v1994 = vpack.c.b16 %v1598, %v1594
    %v1995 = vpack.c.b16 %v1599, %v1595
    %v1996 = vpack.c.b16 %v1604, %v1600
    %v1997 = vpack.c.b16 %v1605, %v1601
    %v1998 = vpack.c.b16 %v1606, %v1602
    %v1999 = vpack.c.b16 %v1607, %v1603
    %v2000 = vpack.c.b16 %v1612, %v1608
    %v2001 = vpack.c.b16 %v1613, %v1609
    %v2002 = vpack.c.b16 %v1614, %v1610
    %v2003 = vpack.c.b16 %v1615, %v1611
    %v2004 = vpack.c.b16 %v1620, %v1616
    %v2005 = vpack.c.b16 %v1621, %v1617
    %v2006 = vpack.c.b16 %v1622, %v1618
    %v2007 = vpack.c.b16 %v1623, %v1619
    %v2008 = vpack.c.b16 %v1628, %v1624
    %v2009 = vpack.c.b16 %v1629, %v1625
    %v2010 = vpack.c.b16 %v1630, %v1626
    %v2011 = vpack.c.b16 %v1631, %v1627
    %v2012 = vpack.c.b16 %v1636, %v1632
    %v2013 = vpack.c.b16 %v1637, %v1633
    %v2014 = vpack.c.b16 %v1638, %v1634
    %v2015 = vpack.c.b16 %v1639, %v1635
    %v2016 = vpack.c.b16 %v1644, %v1640
    %v2017 = vpack.c.b16 %v1645, %v1641
    %v2018 = vpack.c.b16 %v1646, %v1642
    %v2019 = vpack.c.b16 %v1647, %v1643
    %v2020 = vpack.c.b16 %v1652, %v1648
    %v2021 = vpack.c.b16 %v1653, %v1649
    %v2022 = vpack.c.b16 %v1654, %v1650
    %v2023 = vpack.c.b16 %v1655, %v1651
    %v2024 = vpack.c.b16 %v1660, %v1656
    %v2025 = vpack.c.b16 %v1661, %v1657
    %v2026 = vpack.c.b16 %v1662, %v1658
    %v2027 = vpack.c.b16 %v1663, %v1659
    %v2028 = vpack.c.b16 %v1668, %v1664
    %v2029 = vpack.c.b16 %v1669, %v1665
    %v2030 = vpack.c.b16 %v1670, %v1666
    %v2031 = vpack.c.b16 %v1671, %v1667
    %v2032 = vpack.c.b16 %v1676, %v1672
    %v2033 = vpack.c.b16 %v1677, %v1673
    %v2034 = vpack.c.b16 %v1678, %v1674
    %v2035 = vpack.c.b16 %v1679, %v1675
    %v2036 = vpack.c.b16 %v1684, %v1680
    %v2037 = vpack.c.b16 %v1685, %v1681
    %v2038 = vpack.c.b16 %v1686, %v1682
    %v2039 = vpack.c.b16 %v1687, %v1683
    %v2040 = vpack.c.b16 %v1692, %v1688
    %v2041 = vpack.c.b16 %v1693, %v1689
    %v2042 = vpack.c.b16 %v1694, %v1690
    %v2043 = vpack.c.b16 %v1695, %v1691
    %v2044 = vpack.c.b16 %v1700, %v1696
    %v2045 = vpack.c.b16 %v1701, %v1697
    %v2046 = vpack.c.b16 %v1702, %v1698
    %v2047 = vpack.c.b16 %v1703, %v1699
    %v2048 = vpack.c.b16 %v1708, %v1704
    %v2049 = vpack.c.b16 %v1709, %v1705
    %v2050 = vpack.c.b16 %v1710, %v1706
    %v2051 = vpack.c.b16 %v1711, %v1707
    %v2052 = vpack.c.b16 %v1716, %v1712
    %v2053 = vpack.c.b16 %v1717, %v1713
    %v2054 = vpack.c.b16 %v1718, %v1714
    %v2055 = vpack.c.b16 %v1719, %v1715
    %v2056 = vpack.c.b16 %v1724, %v1720
    %v2057 = vpack.c.b16 %v1725, %v1721
    %v2058 = vpack.c.b16 %v1726, %v1722
    %v2059 = vpack.c.b16 %v1727, %v1723
    %v2060 = vpack.c.b16 %v1732, %v1728
    %v2061 = vpack.c.b16 %v1733, %v1729
    %v2062 = vpack.c.b16 %v1734, %v1730
    %v2063 = vpack.c.b16 %v1735, %v1731
    %v2064 = vpack.c.b16 %v1740, %v1736
    %v2065 = vpack.c.b16 %v1741, %v1737
    %v2066 = vpack.c.b16 %v1742, %v1738
    %v2067 = vpack.c.b16 %v1743, %v1739
    %v2068 = vpack.c.b16 %v1748, %v1744
    %v2069 = vpack.c.b16 %v1749, %v1745
    %v2070 = vpack.c.b16 %v1750, %v1746
    %v2071 = vpack.c.b16 %v1751, %v1747
    %v2072 = vpack.c.b16 %v1756, %v1752
    %v2073 = vpack.c.b16 %v1757, %v1753
    %v2074 = vpack.c.b16 %v1758, %v1754
    %v2075 = vpack.c.b16 %v1759, %v1755
    %v2076 = vpack.c.b16 %v1764, %v1760
    %v2077 = vpack.c.b16 %v1765, %v1761
    %v2078 = vpack.c.b16 %v1766, %v1762
    %v2079 = vpack.c.b16 %v1767, %v1763
    %v2080 = vpack.c.b16 %v1772, %v1768
    %v2081 = vpack.c.b16 %v1773, %v1769
    %v2082 = vpack.c.b16 %v1774, %v1770
    %v2083 = vpack.c.b16 %v1775, %v1771
    %v2084 = vpack.c.b16 %v1780, %v1776
    %v2085 = vpack.c.b16 %v1781, %v1777
    %v2086 = vpack.c.b16 %v1782, %v1778
    %v2087 = vpack.c.b16 %v1783, %v1779
    %v2088 = vpack.c.b16 %v1788, %v1784
    %v2089 = vpack.c.b16 %v1789, %v1785
    %v2090 = vpack.c.b16 %v1790, %v1786
    %v2091 = vpack.c.b16 %v1791, %v1787
    %v2092 = vpack.c.b16 %v1796, %v1792
    %v2093 = vpack.c.b16 %v1797, %v1793
    %v2094 = vpack.c.b16 %v1798, %v1794
    %v2095 = vpack.c.b16 %v1799, %v1795
    %v2096 = vpack.c.b16 %v1804, %v1800
    %v2097 = vpack.c.b16 %v1805, %v1801
    %v2098 = vpack.c.b16 %v1806, %v1802
    %v2099 = vpack.c.b16 %v1807, %v1803
    %v2100 = vpack.c.b16 %v1812, %v1808
    %v2101 = vpack.c.b16 %v1813, %v1809
    %v2102 = vpack.c.b16 %v1814, %v1810
    %v2103 = vpack.c.b16 %v1815, %v1811
    %v2104 = vpack.c.b16 %v1820, %v1816
    %v2105 = vpack.c.b16 %v1821, %v1817
    %v2106 = vpack.c.b16 %v1822, %v1818
    %v2107 = vpack.c.b16 %v1823, %v1819
    %v2108 = vpack.c.b16 %v1828, %v1824
    %v2109 = vpack.c.b16 %v1829, %v1825
    %v2110 = vpack.c.b16 %v1830, %v1826
    %v2111 = vpack.c.b16 %v1831, %v1827
    %v2112 = vpack.c.b16 %v1836, %v1832
    %v2113 = vpack.c.b16 %v1837, %v1833
    %v2114 = vpack.c.b16 %v1838, %v1834
    %v2115 = vpack.c.b16 %v1839, %v1835
    %v2116 = vpack.c.b16 %v1844, %v1840
    %v2117 = vpack.c.b16 %v1845, %v1841
    %v2118 = vpack.c.b16 %v1846, %v1842
    %v2119 = vpack.c.b16 %v1847, %v1843
    %v2120 = vpack.c.b16 %v1852, %v1848
    %v2121 = vpack.c.b16 %v1853, %v1849
    %v2122 = vpack.c.b16 %v1854, %v1850
    %v2123 = vpack.c.b16 %v1855, %v1851
    %v2124 = vpack.c.b16 %v1860, %v1856
    %v2125 = vpack.c.b16 %v1861, %v1857
    %v2126 = vpack.c.b16 %v1862, %v1858
    %v2127 = vpack.c.b16 %v1863, %v1859
    %v2128 = vpack.c.b16 %v1868, %v1864
    %v2129 = vpack.c.b16 %v1869, %v1865
    %v2130 = vpack.c.b16 %v1870, %v1866
    %v2131 = vpack.c.b16 %v1871, %v1867
    %v2132 = vpack.c.b16 %v1876, %v1872
    %v2133 = vpack.c.b16 %v1877, %v1873
    %v2134 = vpack.c.b16 %v1878, %v1874
    %v2135 = vpack.c.b16 %v1879, %v1875
    %2392 = vmatpush.bf16.msra.mxu0 %v1908
    %2393 = vmatpush.bf16.msra.mxu0 %v1904
    %2394 = vmatpush.bf16.msra.mxu0 %v1900
    %2395 = vmatpush.bf16.msra.mxu0 %v1896
    %2396 = vmatpush.bf16.msra.mxu0 %v1892
    %2397 = vmatpush.bf16.msra.mxu0 %v1888
    %2398 = vmatpush.bf16.msra.mxu0 %v1884
    %2399 = vmatpush.bf16.msra.mxu0 %v1880
    %2400 = vmatmul.bf16.gmra.mxu0 %v837
    %v2401 = vpop.f32.mrf.mxu0
    %v2402 = vadd.f32 %v1104, %v2401
    %v2403 = vpop.f32.mrf.mxu0
    %2404 = vdwg.mxu0
    %2405 = vmatpush.bf16.msra.mxu0 %v1940
    %2406 = vmatpush.bf16.msra.mxu0 %v1936
    %2407 = vmatpush.bf16.msra.mxu0 %v1932
    %2408 = vmatpush.bf16.msra.mxu0 %v1928
    %2409 = vmatpush.bf16.msra.mxu0 %v1924
    %2410 = vmatpush.bf16.msra.mxu0 %v1920
    %2411 = vmatpush.bf16.msra.mxu0 %v1916
    %2412 = vmatpush.bf16.msra.mxu0 %v1912
    %2413 = vmatmul.bf16.gmra.mxu0 %v838
    %v2414 = vpop.f32.mrf.mxu0
    %v2415 = vadd.f32 %v2402, %v2414
    %v2416 = vpop.f32.mrf.mxu0
    %2417 = vdwg.mxu0
    %2418 = vmatpush.bf16.msra.mxu0 %v1972
    %2419 = vmatpush.bf16.msra.mxu0 %v1968
    %2420 = vmatpush.bf16.msra.mxu0 %v1964
    %2421 = vmatpush.bf16.msra.mxu0 %v1960
    %2422 = vmatpush.bf16.msra.mxu0 %v1956
    %2423 = vmatpush.bf16.msra.mxu0 %v1952
    %2424 = vmatpush.bf16.msra.mxu0 %v1948
    %2425 = vmatpush.bf16.msra.mxu0 %v1944
    %2426 = vmatmul.bf16.gmra.mxu0 %v839
    %v2427 = vpop.f32.mrf.mxu0
    %v2428 = vadd.f32 %v2415, %v2427
    %v2429 = vpop.f32.mrf.mxu0
    %2430 = vdwg.mxu0
    %2431 = vmatpush.bf16.msra.mxu0 %v2004
    %2432 = vmatpush.bf16.msra.mxu0 %v2000
    %2433 = vmatpush.bf16.msra.mxu0 %v1996
    %2434 = vmatpush.bf16.msra.mxu0 %v1992
    %2435 = vmatpush.bf16.msra.mxu0 %v1988
    %2436 = vmatpush.bf16.msra.mxu0 %v1984
    %2437 = vmatpush.bf16.msra.mxu0 %v1980
    %2438 = vmatpush.bf16.msra.mxu0 %v1976
    %2439 = vmatmul.bf16.gmra.mxu0 %v840
    %v2440 = vpop.f32.mrf.mxu0
    %v2441 = vadd.f32 %v2428, %v2440
    %v2442 = vpop.f32.mrf.mxu0
    %2443 = vdwg.mxu0
    %2444 = vmatpush.bf16.msra.mxu0 %v2036
    %2445 = vmatpush.bf16.msra.mxu0 %v2032
    %2446 = vmatpush.bf16.msra.mxu0 %v2028
    %2447 = vmatpush.bf16.msra.mxu0 %v2024
    %2448 = vmatpush.bf16.msra.mxu0 %v2020
    %2449 = vmatpush.bf16.msra.mxu0 %v2016
    %2450 = vmatpush.bf16.msra.mxu0 %v2012
    %2451 = vmatpush.bf16.msra.mxu0 %v2008
    %2452 = vmatmul.bf16.gmra.mxu0 %v841
    %v2453 = vpop.f32.mrf.mxu0
    %v2454 = vadd.f32 %v2441, %v2453
    %v2455 = vpop.f32.mrf.mxu0
    %2456 = vdwg.mxu0
    %2457 = vmatpush.bf16.msra.mxu0 %v2068
    %2458 = vmatpush.bf16.msra.mxu0 %v2064
    %2459 = vmatpush.bf16.msra.mxu0 %v2060
    %2460 = vmatpush.bf16.msra.mxu0 %v2056
    %2461 = vmatpush.bf16.msra.mxu0 %v2052
    %2462 = vmatpush.bf16.msra.mxu0 %v2048
    %2463 = vmatpush.bf16.msra.mxu0 %v2044
    %2464 = vmatpush.bf16.msra.mxu0 %v2040
    %2465 = vmatmul.bf16.gmra.mxu0 %v842
    %v2466 = vpop.f32.mrf.mxu0
    %v2467 = vadd.f32 %v2454, %v2466
    %v2468 = vpop.f32.mrf.mxu0
    %2469 = vdwg.mxu0
    %2470 = vmatpush.bf16.msra.mxu0 %v2100
    %2471 = vmatpush.bf16.msra.mxu0 %v2096
    %2472 = vmatpush.bf16.msra.mxu0 %v2092
    %2473 = vmatpush.bf16.msra.mxu0 %v2088
    %2474 = vmatpush.bf16.msra.mxu0 %v2084
    %2475 = vmatpush.bf16.msra.mxu0 %v2080
    %2476 = vmatpush.bf16.msra.mxu0 %v2076
    %2477 = vmatpush.bf16.msra.mxu0 %v2072
    %2478 = vmatmul.bf16.gmra.mxu0 %v843
    %v2479 = vpop.f32.mrf.mxu0
    %v2480 = vadd.f32 %v2467, %v2479
    %v2481 = vpop.f32.mrf.mxu0
    %2482 = vdwg.mxu0
    %2483 = vmatpush.bf16.msra.mxu0 %v2132
    %2484 = vmatpush.bf16.msra.mxu0 %v2128
    %2485 = vmatpush.bf16.msra.mxu0 %v2124
    %2486 = vmatpush.bf16.msra.mxu0 %v2120
    %2487 = vmatpush.bf16.msra.mxu0 %v2116
    %2488 = vmatpush.bf16.msra.mxu0 %v2112
    %2489 = vmatpush.bf16.msra.mxu0 %v2108
    %2490 = vmatpush.bf16.msra.mxu0 %v2104
    %2491 = vmatmul.bf16.gmra.mxu0 %v844
    %v2492 = vpop.f32.mrf.mxu0
    %v2493 = vadd.f32 %v2480, %v2492
    %v2494 = vpop.f32.mrf.mxu0
    %2495 = vdwg.mxu0
    %2496 = vmatpush.bf16.msra.mxu0 %v1909
    %2497 = vmatpush.bf16.msra.mxu0 %v1905
    %2498 = vmatpush.bf16.msra.mxu0 %v1901
    %2499 = vmatpush.bf16.msra.mxu0 %v1897
    %2500 = vmatpush.bf16.msra.mxu0 %v1893
    %2501 = vmatpush.bf16.msra.mxu0 %v1889
    %2502 = vmatpush.bf16.msra.mxu0 %v1885
    %2503 = vmatpush.bf16.msra.mxu0 %v1881
    %2504 = vmatmul.bf16.gmra.mxu0 %v837
    %v2505 = vpop.f32.mrf.mxu0
    %v2506 = vadd.f32 %v1105, %v2505
    %v2507 = vpop.f32.mrf.mxu0
    %2508 = vdwg.mxu0
    %2509 = vmatpush.bf16.msra.mxu0 %v1941
    %2510 = vmatpush.bf16.msra.mxu0 %v1937
    %2511 = vmatpush.bf16.msra.mxu0 %v1933
    %2512 = vmatpush.bf16.msra.mxu0 %v1929
    %2513 = vmatpush.bf16.msra.mxu0 %v1925
    %2514 = vmatpush.bf16.msra.mxu0 %v1921
    %2515 = vmatpush.bf16.msra.mxu0 %v1917
    %2516 = vmatpush.bf16.msra.mxu0 %v1913
    %2517 = vmatmul.bf16.gmra.mxu0 %v838
    %v2518 = vpop.f32.mrf.mxu0
    %v2519 = vadd.f32 %v2506, %v2518
    %v2520 = vpop.f32.mrf.mxu0
    %2521 = vdwg.mxu0
    %2522 = vmatpush.bf16.msra.mxu0 %v1973
    %2523 = vmatpush.bf16.msra.mxu0 %v1969
    %2524 = vmatpush.bf16.msra.mxu0 %v1965
    %2525 = vmatpush.bf16.msra.mxu0 %v1961
    %2526 = vmatpush.bf16.msra.mxu0 %v1957
    %2527 = vmatpush.bf16.msra.mxu0 %v1953
    %2528 = vmatpush.bf16.msra.mxu0 %v1949
    %2529 = vmatpush.bf16.msra.mxu0 %v1945
    %2530 = vmatmul.bf16.gmra.mxu0 %v839
    %v2531 = vpop.f32.mrf.mxu0
    %v2532 = vadd.f32 %v2519, %v2531
    %v2533 = vpop.f32.mrf.mxu0
    %2534 = vdwg.mxu0
    %2535 = vmatpush.bf16.msra.mxu0 %v2005
    %2536 = vmatpush.bf16.msra.mxu0 %v2001
    %2537 = vmatpush.bf16.msra.mxu0 %v1997
    %2538 = vmatpush.bf16.msra.mxu0 %v1993
    %2539 = vmatpush.bf16.msra.mxu0 %v1989
    %2540 = vmatpush.bf16.msra.mxu0 %v1985
    %2541 = vmatpush.bf16.msra.mxu0 %v1981
    %2542 = vmatpush.bf16.msra.mxu0 %v1977
    %2543 = vmatmul.bf16.gmra.mxu0 %v840
    %v2544 = vpop.f32.mrf.mxu0
    %v2545 = vadd.f32 %v2532, %v2544
    %v2546 = vpop.f32.mrf.mxu0
    %2547 = vdwg.mxu0
    %2548 = vmatpush.bf16.msra.mxu0 %v2037
    %2549 = vmatpush.bf16.msra.mxu0 %v2033
    %2550 = vmatpush.bf16.msra.mxu0 %v2029
    %2551 = vmatpush.bf16.msra.mxu0 %v2025
    %2552 = vmatpush.bf16.msra.mxu0 %v2021
    %2553 = vmatpush.bf16.msra.mxu0 %v2017
    %2554 = vmatpush.bf16.msra.mxu0 %v2013
    %2555 = vmatpush.bf16.msra.mxu0 %v2009
    %2556 = vmatmul.bf16.gmra.mxu0 %v841
    %v2557 = vpop.f32.mrf.mxu0
    %v2558 = vadd.f32 %v2545, %v2557
    %v2559 = vpop.f32.mrf.mxu0
    %2560 = vdwg.mxu0
    %2561 = vmatpush.bf16.msra.mxu0 %v2069
    %2562 = vmatpush.bf16.msra.mxu0 %v2065
    %2563 = vmatpush.bf16.msra.mxu0 %v2061
    %2564 = vmatpush.bf16.msra.mxu0 %v2057
    %2565 = vmatpush.bf16.msra.mxu0 %v2053
    %2566 = vmatpush.bf16.msra.mxu0 %v2049
    %2567 = vmatpush.bf16.msra.mxu0 %v2045
    %2568 = vmatpush.bf16.msra.mxu0 %v2041
    %2569 = vmatmul.bf16.gmra.mxu0 %v842
    %v2570 = vpop.f32.mrf.mxu0
    %v2571 = vadd.f32 %v2558, %v2570
    %v2572 = vpop.f32.mrf.mxu0
    %2573 = vdwg.mxu0
    %2574 = vmatpush.bf16.msra.mxu0 %v2101
    %2575 = vmatpush.bf16.msra.mxu0 %v2097
    %2576 = vmatpush.bf16.msra.mxu0 %v2093
    %2577 = vmatpush.bf16.msra.mxu0 %v2089
    %2578 = vmatpush.bf16.msra.mxu0 %v2085
    %2579 = vmatpush.bf16.msra.mxu0 %v2081
    %2580 = vmatpush.bf16.msra.mxu0 %v2077
    %2581 = vmatpush.bf16.msra.mxu0 %v2073
    %2582 = vmatmul.bf16.gmra.mxu0 %v843
    %v2583 = vpop.f32.mrf.mxu0
    %v2584 = vadd.f32 %v2571, %v2583
    %v2585 = vpop.f32.mrf.mxu0
    %2586 = vdwg.mxu0
    %2587 = vmatpush.bf16.msra.mxu0 %v2133
    %2588 = vmatpush.bf16.msra.mxu0 %v2129
    %2589 = vmatpush.bf16.msra.mxu0 %v2125
    %2590 = vmatpush.bf16.msra.mxu0 %v2121
    %2591 = vmatpush.bf16.msra.mxu0 %v2117
    %2592 = vmatpush.bf16.msra.mxu0 %v2113
    %2593 = vmatpush.bf16.msra.mxu0 %v2109
    %2594 = vmatpush.bf16.msra.mxu0 %v2105
    %2595 = vmatmul.bf16.gmra.mxu0 %v844
    %v2596 = vpop.f32.mrf.mxu0
    %v2597 = vadd.f32 %v2584, %v2596
    %v2598 = vpop.f32.mrf.mxu0
    %2599 = vdwg.mxu0
    %2600 = vmatpush.bf16.msra.mxu0 %v1910
    %2601 = vmatpush.bf16.msra.mxu0 %v1906
    %2602 = vmatpush.bf16.msra.mxu0 %v1902
    %2603 = vmatpush.bf16.msra.mxu0 %v1898
    %2604 = vmatpush.bf16.msra.mxu0 %v1894
    %2605 = vmatpush.bf16.msra.mxu0 %v1890
    %2606 = vmatpush.bf16.msra.mxu0 %v1886
    %2607 = vmatpush.bf16.msra.mxu0 %v1882
    %2608 = vmatmul.bf16.gmra.mxu0 %v837
    %v2609 = vpop.f32.mrf.mxu0
    %v2610 = vadd.f32 %v1106, %v2609
    %v2611 = vpop.f32.mrf.mxu0
    %2612 = vdwg.mxu0
    %2613 = vmatpush.bf16.msra.mxu0 %v1942
    %2614 = vmatpush.bf16.msra.mxu0 %v1938
    %2615 = vmatpush.bf16.msra.mxu0 %v1934
    %2616 = vmatpush.bf16.msra.mxu0 %v1930
    %2617 = vmatpush.bf16.msra.mxu0 %v1926
    %2618 = vmatpush.bf16.msra.mxu0 %v1922
    %2619 = vmatpush.bf16.msra.mxu0 %v1918
    %2620 = vmatpush.bf16.msra.mxu0 %v1914
    %2621 = vmatmul.bf16.gmra.mxu0 %v838
    %v2622 = vpop.f32.mrf.mxu0
    %v2623 = vadd.f32 %v2610, %v2622
    %v2624 = vpop.f32.mrf.mxu0
    %2625 = vdwg.mxu0
    %2626 = vmatpush.bf16.msra.mxu0 %v1974
    %2627 = vmatpush.bf16.msra.mxu0 %v1970
    %2628 = vmatpush.bf16.msra.mxu0 %v1966
    %2629 = vmatpush.bf16.msra.mxu0 %v1962
    %2630 = vmatpush.bf16.msra.mxu0 %v1958
    %2631 = vmatpush.bf16.msra.mxu0 %v1954
    %2632 = vmatpush.bf16.msra.mxu0 %v1950
    %2633 = vmatpush.bf16.msra.mxu0 %v1946
    %2634 = vmatmul.bf16.gmra.mxu0 %v839
    %v2635 = vpop.f32.mrf.mxu0
    %v2636 = vadd.f32 %v2623, %v2635
    %v2637 = vpop.f32.mrf.mxu0
    %2638 = vdwg.mxu0
    %2639 = vmatpush.bf16.msra.mxu0 %v2006
    %2640 = vmatpush.bf16.msra.mxu0 %v2002
    %2641 = vmatpush.bf16.msra.mxu0 %v1998
    %2642 = vmatpush.bf16.msra.mxu0 %v1994
    %2643 = vmatpush.bf16.msra.mxu0 %v1990
    %2644 = vmatpush.bf16.msra.mxu0 %v1986
    %2645 = vmatpush.bf16.msra.mxu0 %v1982
    %2646 = vmatpush.bf16.msra.mxu0 %v1978
    %2647 = vmatmul.bf16.gmra.mxu0 %v840
    %v2648 = vpop.f32.mrf.mxu0
    %v2649 = vadd.f32 %v2636, %v2648
    %v2650 = vpop.f32.mrf.mxu0
    %2651 = vdwg.mxu0
    %2652 = vmatpush.bf16.msra.mxu0 %v2038
    %2653 = vmatpush.bf16.msra.mxu0 %v2034
    %2654 = vmatpush.bf16.msra.mxu0 %v2030
    %2655 = vmatpush.bf16.msra.mxu0 %v2026
    %2656 = vmatpush.bf16.msra.mxu0 %v2022
    %2657 = vmatpush.bf16.msra.mxu0 %v2018
    %2658 = vmatpush.bf16.msra.mxu0 %v2014
    %2659 = vmatpush.bf16.msra.mxu0 %v2010
    %2660 = vmatmul.bf16.gmra.mxu0 %v841
    %v2661 = vpop.f32.mrf.mxu0
    %v2662 = vadd.f32 %v2649, %v2661
    %v2663 = vpop.f32.mrf.mxu0
    %2664 = vdwg.mxu0
    %2665 = vmatpush.bf16.msra.mxu0 %v2070
    %2666 = vmatpush.bf16.msra.mxu0 %v2066
    %2667 = vmatpush.bf16.msra.mxu0 %v2062
    %2668 = vmatpush.bf16.msra.mxu0 %v2058
    %2669 = vmatpush.bf16.msra.mxu0 %v2054
    %2670 = vmatpush.bf16.msra.mxu0 %v2050
    %2671 = vmatpush.bf16.msra.mxu0 %v2046
    %2672 = vmatpush.bf16.msra.mxu0 %v2042
    %2673 = vmatmul.bf16.gmra.mxu0 %v842
    %v2674 = vpop.f32.mrf.mxu0
    %v2675 = vadd.f32 %v2662, %v2674
    %v2676 = vpop.f32.mrf.mxu0
    %2677 = vdwg.mxu0
    %2678 = vmatpush.bf16.msra.mxu0 %v2102
    %2679 = vmatpush.bf16.msra.mxu0 %v2098
    %2680 = vmatpush.bf16.msra.mxu0 %v2094
    %2681 = vmatpush.bf16.msra.mxu0 %v2090
    %2682 = vmatpush.bf16.msra.mxu0 %v2086
    %2683 = vmatpush.bf16.msra.mxu0 %v2082
    %2684 = vmatpush.bf16.msra.mxu0 %v2078
    %2685 = vmatpush.bf16.msra.mxu0 %v2074
    %2686 = vmatmul.bf16.gmra.mxu0 %v843
    %v2687 = vpop.f32.mrf.mxu0
    %v2688 = vadd.f32 %v2675, %v2687
    %v2689 = vpop.f32.mrf.mxu0
    %2690 = vdwg.mxu0
    %2691 = vmatpush.bf16.msra.mxu0 %v2134
    %2692 = vmatpush.bf16.msra.mxu0 %v2130
    %2693 = vmatpush.bf16.msra.mxu0 %v2126
    %2694 = vmatpush.bf16.msra.mxu0 %v2122
    %2695 = vmatpush.bf16.msra.mxu0 %v2118
    %2696 = vmatpush.bf16.msra.mxu0 %v2114
    %2697 = vmatpush.bf16.msra.mxu0 %v2110
    %2698 = vmatpush.bf16.msra.mxu0 %v2106
    %2699 = vmatmul.bf16.gmra.mxu0 %v844
    %v2700 = vpop.f32.mrf.mxu0
    %v2701 = vadd.f32 %v2688, %v2700
    %v2702 = vpop.f32.mrf.mxu0
    %2703 = vdwg.mxu0
    %2704 = vmatpush.bf16.msra.mxu0 %v1911
    %2705 = vmatpush.bf16.msra.mxu0 %v1907
    %2706 = vmatpush.bf16.msra.mxu0 %v1903
    %2707 = vmatpush.bf16.msra.mxu0 %v1899
    %2708 = vmatpush.bf16.msra.mxu0 %v1895
    %2709 = vmatpush.bf16.msra.mxu0 %v1891
    %2710 = vmatpush.bf16.msra.mxu0 %v1887
    %2711 = vmatpush.bf16.msra.mxu0 %v1883
    %2712 = vmatmul.bf16.gmra.mxu0 %v837
    %v2713 = vpop.f32.mrf.mxu0
    %v2714 = vadd.f32 %v1107, %v2713
    %v2715 = vpop.f32.mrf.mxu0
    %2716 = vdwg.mxu0
    %2717 = vmatpush.bf16.msra.mxu0 %v1943
    %2718 = vmatpush.bf16.msra.mxu0 %v1939
    %2719 = vmatpush.bf16.msra.mxu0 %v1935
    %2720 = vmatpush.bf16.msra.mxu0 %v1931
    %2721 = vmatpush.bf16.msra.mxu0 %v1927
    %2722 = vmatpush.bf16.msra.mxu0 %v1923
    %2723 = vmatpush.bf16.msra.mxu0 %v1919
    %2724 = vmatpush.bf16.msra.mxu0 %v1915
    %2725 = vmatmul.bf16.gmra.mxu0 %v838
    %v2726 = vpop.f32.mrf.mxu0
    %v2727 = vadd.f32 %v2714, %v2726
    %v2728 = vpop.f32.mrf.mxu0
    %2729 = vdwg.mxu0
    %2730 = vmatpush.bf16.msra.mxu0 %v1975
    %2731 = vmatpush.bf16.msra.mxu0 %v1971
    %2732 = vmatpush.bf16.msra.mxu0 %v1967
    %2733 = vmatpush.bf16.msra.mxu0 %v1963
    %2734 = vmatpush.bf16.msra.mxu0 %v1959
    %2735 = vmatpush.bf16.msra.mxu0 %v1955
    %2736 = vmatpush.bf16.msra.mxu0 %v1951
    %2737 = vmatpush.bf16.msra.mxu0 %v1947
    %2738 = vmatmul.bf16.gmra.mxu0 %v839
    %v2739 = vpop.f32.mrf.mxu0
    %v2740 = vadd.f32 %v2727, %v2739
    %v2741 = vpop.f32.mrf.mxu0
    %2742 = vdwg.mxu0
    %2743 = vmatpush.bf16.msra.mxu0 %v2007
    %2744 = vmatpush.bf16.msra.mxu0 %v2003
    %2745 = vmatpush.bf16.msra.mxu0 %v1999
    %2746 = vmatpush.bf16.msra.mxu0 %v1995
    %2747 = vmatpush.bf16.msra.mxu0 %v1991
    %2748 = vmatpush.bf16.msra.mxu0 %v1987
    %2749 = vmatpush.bf16.msra.mxu0 %v1983
    %2750 = vmatpush.bf16.msra.mxu0 %v1979
    %2751 = vmatmul.bf16.gmra.mxu0 %v840
    %v2752 = vpop.f32.mrf.mxu0
    %v2753 = vadd.f32 %v2740, %v2752
    %v2754 = vpop.f32.mrf.mxu0
    %2755 = vdwg.mxu0
    %2756 = vmatpush.bf16.msra.mxu0 %v2039
    %2757 = vmatpush.bf16.msra.mxu0 %v2035
    %2758 = vmatpush.bf16.msra.mxu0 %v2031
    %2759 = vmatpush.bf16.msra.mxu0 %v2027
    %2760 = vmatpush.bf16.msra.mxu0 %v2023
    %2761 = vmatpush.bf16.msra.mxu0 %v2019
    %2762 = vmatpush.bf16.msra.mxu0 %v2015
    %2763 = vmatpush.bf16.msra.mxu0 %v2011
    %2764 = vmatmul.bf16.gmra.mxu0 %v841
    %v2765 = vpop.f32.mrf.mxu0
    %v2766 = vadd.f32 %v2753, %v2765
    %v2767 = vpop.f32.mrf.mxu0
    %2768 = vdwg.mxu0
    %2769 = vmatpush.bf16.msra.mxu0 %v2071
    %2770 = vmatpush.bf16.msra.mxu0 %v2067
    %2771 = vmatpush.bf16.msra.mxu0 %v2063
    %2772 = vmatpush.bf16.msra.mxu0 %v2059
    %2773 = vmatpush.bf16.msra.mxu0 %v2055
    %2774 = vmatpush.bf16.msra.mxu0 %v2051
    %2775 = vmatpush.bf16.msra.mxu0 %v2047
    %2776 = vmatpush.bf16.msra.mxu0 %v2043
    %2777 = vmatmul.bf16.gmra.mxu0 %v842
    %v2778 = vpop.f32.mrf.mxu0
    %v2779 = vadd.f32 %v2766, %v2778
    %v2780 = vpop.f32.mrf.mxu0
    %2781 = vdwg.mxu0
    %2782 = vmatpush.bf16.msra.mxu0 %v2103
    %2783 = vmatpush.bf16.msra.mxu0 %v2099
    %2784 = vmatpush.bf16.msra.mxu0 %v2095
    %2785 = vmatpush.bf16.msra.mxu0 %v2091
    %2786 = vmatpush.bf16.msra.mxu0 %v2087
    %2787 = vmatpush.bf16.msra.mxu0 %v2083
    %2788 = vmatpush.bf16.msra.mxu0 %v2079
    %2789 = vmatpush.bf16.msra.mxu0 %v2075
    %2790 = vmatmul.bf16.gmra.mxu0 %v843
    %v2791 = vpop.f32.mrf.mxu0
    %v2792 = vadd.f32 %v2779, %v2791
    %v2793 = vpop.f32.mrf.mxu0
    %2794 = vdwg.mxu0
    %2795 = vmatpush.bf16.msra.mxu0 %v2135
    %2796 = vmatpush.bf16.msra.mxu0 %v2131
    %2797 = vmatpush.bf16.msra.mxu0 %v2127
    %2798 = vmatpush.bf16.msra.mxu0 %v2123
    %2799 = vmatpush.bf16.msra.mxu0 %v2119
    %2800 = vmatpush.bf16.msra.mxu0 %v2115
    %2801 = vmatpush.bf16.msra.mxu0 %v2111
    %2802 = vmatpush.bf16.msra.mxu0 %v2107
    %2803 = vmatmul.bf16.gmra.mxu0 %v844
    %v2804 = vpop.f32.mrf.mxu0
    %v2805 = vadd.f32 %v2792, %v2804
    %v2806 = vpop.f32.mrf.mxu0
    %2807 = vdwg.mxu0
    %v2808 = vmax.f32 %v2493, 0.0
    %v2809 = vmax.f32 %v2597, 0.0
    %v2810 = vpack.c.bf16 %v2808, %v2808
    %v2811 = vpack.c.bf16 %v2809, %v2809
    %v2812 = vld [vmem:[#allocation6 + $0x240] sm:$0xff]
    %v2813 = vld [vmem:[#allocation6 + $0x248] sm:$0xff]
    %v2814 = vld [vmem:[#allocation6 + $0x250] sm:$0xff]
    %v2815 = vld [vmem:[#allocation6 + $0x258] sm:$0xff]
    %v2816 = vld [vmem:[#allocation6 + $0x260] sm:$0xff]
    %v2817 = vld [vmem:[#allocation6 + $0x268] sm:$0xff]
    %v2818 = vld [vmem:[#allocation6 + $0x270] sm:$0xff]
    %v2819 = vld [vmem:[#allocation6 + $0x278] sm:$0xff]
    %v2820 = vld [vmem:[#allocation6 + $0x280] sm:$0xff]
    %v2821 = vld [vmem:[#allocation6 + $0x288] sm:$0xff]
    %v2822 = vld [vmem:[#allocation6 + $0x290] sm:$0xff]
    %v2823 = vld [vmem:[#allocation6 + $0x298] sm:$0xff]
    %v2824 = vld [vmem:[#allocation6 + $0x2a0] sm:$0xff]
    %v2825 = vld [vmem:[#allocation6 + $0x2a8] sm:$0xff]
    %v2826 = vld [vmem:[#allocation6 + $0x2b0] sm:$0xff]
    %v2827 = vld [vmem:[#allocation6 + $0x2b8] sm:$0xff]
    %v2828 = vld [vmem:[#allocation6 + $0x2c0] sm:$0xff]
    %v2829 = vld [vmem:[#allocation6 + $0x2c8] sm:$0xff]
    %v2830 = vld [vmem:[#allocation6 + $0x2d0] sm:$0xff]
    %v2831 = vld [vmem:[#allocation6 + $0x2d8] sm:$0xff]
    %v2832 = vld [vmem:[#allocation6 + $0x2e0] sm:$0xff]
    %v2833 = vld [vmem:[#allocation6 + $0x2e8] sm:$0xff]
    %v2834 = vld [vmem:[#allocation6 + $0x2f0] sm:$0xff]
    %v2835 = vld [vmem:[#allocation6 + $0x2f8] sm:$0xff]
    %v2836 = vld [vmem:[#allocation6 + $0x300] sm:$0xff]
    %v2837 = vld [vmem:[#allocation6 + $0x308] sm:$0xff]
    %v2838 = vld [vmem:[#allocation6 + $0x310] sm:$0xff]
    %v2839 = vld [vmem:[#allocation6 + $0x318] sm:$0xff]
    %v2840 = vld [vmem:[#allocation6 + $0x320] sm:$0xff]
    %v2841 = vld [vmem:[#allocation6 + $0x328] sm:$0xff]
    %v2842 = vld [vmem:[#allocation6 + $0x330] sm:$0xff]
    %v2843 = vld [vmem:[#allocation6 + $0x338] sm:$0xff]
    %s2844 = scalar_lea.vmem %s3, 4
    %v2845 = vld [vmem:[%s2844] ss:$8 sm:$0x3]
    %v2847 = vperm.slane %v2845, 0
    %v2848 = vperm.slane %v2845, 1
    %v2883 = vunpack.c.l.b16 %v2812
    %v2884 = vunpack.c.h.b16 %v2812
    %v2885 = vunpack.c.l.b16 %v2813
    %v2886 = vunpack.c.h.b16 %v2813
    %v2887 = vunpack.c.l.b16 %v2814
    %v2888 = vunpack.c.h.b16 %v2814
    %v2889 = vunpack.c.l.b16 %v2815
    %v2890 = vunpack.c.h.b16 %v2815
    %v2891 = vunpack.c.l.b16 %v2816
    %v2892 = vunpack.c.h.b16 %v2816
    %v2893 = vunpack.c.l.b16 %v2817
    %v2894 = vunpack.c.h.b16 %v2817
    %v2895 = vunpack.c.l.b16 %v2818
    %v2896 = vunpack.c.h.b16 %v2818
    %v2897 = vunpack.c.l.b16 %v2819
    %v2898 = vunpack.c.h.b16 %v2819
    %v2899 = vunpack.c.l.b16 %v2820
    %v2900 = vunpack.c.h.b16 %v2820
    %v2901 = vunpack.c.l.b16 %v2821
    %v2902 = vunpack.c.h.b16 %v2821
    %v2903 = vunpack.c.l.b16 %v2822
    %v2904 = vunpack.c.h.b16 %v2822
    %v2905 = vunpack.c.l.b16 %v2823
    %v2906 = vunpack.c.h.b16 %v2823
    %v2907 = vunpack.c.l.b16 %v2824
    %v2908 = vunpack.c.h.b16 %v2824
    %v2909 = vunpack.c.l.b16 %v2825
    %v2910 = vunpack.c.h.b16 %v2825
    %v2911 = vunpack.c.l.b16 %v2826
    %v2912 = vunpack.c.h.b16 %v2826
    %v2913 = vunpack.c.l.b16 %v2827
    %v2914 = vunpack.c.h.b16 %v2827
    %v2915 = vunpack.c.l.b16 %v2828
    %v2916 = vunpack.c.h.b16 %v2828
    %v2917 = vunpack.c.l.b16 %v2829
    %v2918 = vunpack.c.h.b16 %v2829
    %v2919 = vunpack.c.l.b16 %v2830
    %v2920 = vunpack.c.h.b16 %v2830
    %v2921 = vunpack.c.l.b16 %v2831
    %v2922 = vunpack.c.h.b16 %v2831
    %v2923 = vunpack.c.l.b16 %v2832
    %v2924 = vunpack.c.h.b16 %v2832
    %v2925 = vunpack.c.l.b16 %v2833
    %v2926 = vunpack.c.h.b16 %v2833
    %v2927 = vunpack.c.l.b16 %v2834
    %v2928 = vunpack.c.h.b16 %v2834
    %v2929 = vunpack.c.l.b16 %v2835
    %v2930 = vunpack.c.h.b16 %v2835
    %v2931 = vunpack.c.l.b16 %v2836
    %v2932 = vunpack.c.h.b16 %v2836
    %v2933 = vunpack.c.l.b16 %v2837
    %v2934 = vunpack.c.h.b16 %v2837
    %v2935 = vunpack.c.l.b16 %v2838
    %v2936 = vunpack.c.h.b16 %v2838
    %v2937 = vunpack.c.l.b16 %v2839
    %v2938 = vunpack.c.h.b16 %v2839
    %v2939 = vunpack.c.l.b16 %v2840
    %v2940 = vunpack.c.h.b16 %v2840
    %v2941 = vunpack.c.l.b16 %v2841
    %v2942 = vunpack.c.h.b16 %v2841
    %v2943 = vunpack.c.l.b16 %v2842
    %v2944 = vunpack.c.h.b16 %v2842
    %v2945 = vunpack.c.l.b16 %v2843
    %v2946 = vunpack.c.h.b16 %v2843
    %v2947 = vpack.c.b16 %v2885, %v2883
    %v2948 = vpack.c.b16 %v2886, %v2884
    %v2949 = vpack.c.b16 %v2889, %v2887
    %v2950 = vpack.c.b16 %v2890, %v2888
    %v2951 = vpack.c.b16 %v2893, %v2891
    %v2952 = vpack.c.b16 %v2894, %v2892
    %v2953 = vpack.c.b16 %v2897, %v2895
    %v2954 = vpack.c.b16 %v2898, %v2896
    %v2955 = vpack.c.b16 %v2901, %v2899
    %v2956 = vpack.c.b16 %v2902, %v2900
    %v2957 = vpack.c.b16 %v2905, %v2903
    %v2958 = vpack.c.b16 %v2906, %v2904
    %v2959 = vpack.c.b16 %v2909, %v2907
    %v2960 = vpack.c.b16 %v2910, %v2908
    %v2961 = vpack.c.b16 %v2913, %v2911
    %v2962 = vpack.c.b16 %v2914, %v2912
    %v2963 = vpack.c.b16 %v2917, %v2915
    %v2964 = vpack.c.b16 %v2918, %v2916
    %v2965 = vpack.c.b16 %v2921, %v2919
    %v2966 = vpack.c.b16 %v2922, %v2920
    %v2967 = vpack.c.b16 %v2925, %v2923
    %v2968 = vpack.c.b16 %v2926, %v2924
    %v2969 = vpack.c.b16 %v2929, %v2927
    %v2970 = vpack.c.b16 %v2930, %v2928
    %v2971 = vpack.c.b16 %v2933, %v2931
    %v2972 = vpack.c.b16 %v2934, %v2932
    %v2973 = vpack.c.b16 %v2937, %v2935
    %v2974 = vpack.c.b16 %v2938, %v2936
    %v2975 = vpack.c.b16 %v2941, %v2939
    %v2976 = vpack.c.b16 %v2942, %v2940
    %v2977 = vpack.c.b16 %v2945, %v2943
    %v2978 = vpack.c.b16 %v2946, %v2944
    %3011 = vmatpush.bf16.msra.mxu0 %v2961
    %3012 = vmatpush.bf16.msra.mxu0 %v2959
    %3013 = vmatpush.bf16.msra.mxu0 %v2957
    %3014 = vmatpush.bf16.msra.mxu0 %v2955
    %3015 = vmatpush.bf16.msra.mxu0 %v2953
    %3016 = vmatpush.bf16.msra.mxu0 %v2951
    %3017 = vmatpush.bf16.msra.mxu0 %v2949
    %3018 = vmatpush.bf16.msra.mxu0 %v2947
    %3019 = vmatmul.bf16.gmra.mxu0 %v2810
    %v3020 = vpop.f32.mrf.mxu0
    %v3021 = vadd.f32 %v2847, %v3020
    %v3022 = vpop.f32.mrf.mxu0
    %3023 = vdwg.mxu0
    %3024 = vmatpush.bf16.msra.mxu0 %v2977
    %3025 = vmatpush.bf16.msra.mxu0 %v2975
    %3026 = vmatpush.bf16.msra.mxu0 %v2973
    %3027 = vmatpush.bf16.msra.mxu0 %v2971
    %3028 = vmatpush.bf16.msra.mxu0 %v2969
    %3029 = vmatpush.bf16.msra.mxu0 %v2967
    %3030 = vmatpush.bf16.msra.mxu0 %v2965
    %3031 = vmatpush.bf16.msra.mxu0 %v2963
    %3032 = vmatmul.bf16.gmra.mxu0 %v2811
    %v3033 = vpop.f32.mrf.mxu0
    %v3034 = vadd.f32 %v3021, %v3033
    %v3035 = vpop.f32.mrf.mxu0
    %3036 = vdwg.mxu0
    %3037 = vmatpush.bf16.msra.mxu0 %v2962
    %3038 = vmatpush.bf16.msra.mxu0 %v2960
    %3039 = vmatpush.bf16.msra.mxu0 %v2958
    %3040 = vmatpush.bf16.msra.mxu0 %v2956
    %3041 = vmatpush.bf16.msra.mxu0 %v2954
    %3042 = vmatpush.bf16.msra.mxu0 %v2952
    %3043 = vmatpush.bf16.msra.mxu0 %v2950
    %3044 = vmatpush.bf16.msra.mxu0 %v2948
    %3045 = vmatmul.bf16.gmra.mxu0 %v2810
    %v3046 = vpop.f32.mrf.mxu0
    %v3047 = vadd.f32 %v2848, %v3046
    %v3048 = vpop.f32.mrf.mxu0
    %3049 = vdwg.mxu0
    %3050 = vmatpush.bf16.msra.mxu0 %v2978
    %3051 = vmatpush.bf16.msra.mxu0 %v2976
    %3052 = vmatpush.bf16.msra.mxu0 %v2974
    %3053 = vmatpush.bf16.msra.mxu0 %v2972
    %3054 = vmatpush.bf16.msra.mxu0 %v2970
    %3055 = vmatpush.bf16.msra.mxu0 %v2968
    %3056 = vmatpush.bf16.msra.mxu0 %v2966
    %3057 = vmatpush.bf16.msra.mxu0 %v2964
    %3058 = vmatmul.bf16.gmra.mxu0 %v2811
    %v3059 = vpop.f32.mrf.mxu0
    %v3060 = vadd.f32 %v3047, %v3059
    %v3061 = vpop.f32.mrf.mxu0
    %3062 = vdwg.mxu0
    %v3063 = vmax.f32 %v3034, 0.0
    %v3064 = vmax.f32 %v3060, 0.0
    %v3065 = vpack.c.bf16 %v3063, %v3063
    %v3066 = vpack.c.bf16 %v3064, %v3064
    %v3067 = vld [vmem:[#allocation6 + $0x340] sm:$0xff]
    %v3068 = vld [vmem:[#allocation6 + $0x348] sm:$0xff]
    %v3069 = vld [vmem:[#allocation6 + $0x350] sm:$0xff]
    %v3070 = vld [vmem:[#allocation6 + $0x358] sm:$0xff]
    %v3071 = vld [vmem:[#allocation6 + $0x360] sm:$0xff]
    %v3072 = vld [vmem:[#allocation6 + $0x368] sm:$0xff]
    %v3073 = vld [vmem:[#allocation6 + $0x370] sm:$0xff]
    %v3074 = vld [vmem:[#allocation6 + $0x378] sm:$0xff]
    %v3075 = vld [vmem:[#allocation6 + $0x380] sm:$0xff]
    %v3076 = vld [vmem:[#allocation6 + $0x388] sm:$0xff]
    %v3077 = vld [vmem:[#allocation6 + $0x390] sm:$0xff]
    %v3078 = vld [vmem:[#allocation6 + $0x398] sm:$0xff]
    %v3079 = vld [vmem:[#allocation6 + $0x3a0] sm:$0xff]
    %v3080 = vld [vmem:[#allocation6 + $0x3a8] sm:$0xff]
    %v3081 = vld [vmem:[#allocation6 + $0x3b0] sm:$0xff]
    %v3082 = vld [vmem:[#allocation6 + $0x3b8] sm:$0xff]
    %v3083 = vld [vmem:[#allocation6 + $0x3c0] sm:$0xff]
    %v3084 = vld [vmem:[#allocation6 + $0x3c8] sm:$0xff]
    %v3085 = vld [vmem:[#allocation6 + $0x3d0] sm:$0xff]
    %v3086 = vld [vmem:[#allocation6 + $0x3d8] sm:$0xff]
    %v3087 = vld [vmem:[#allocation6 + $0x3e0] sm:$0xff]
    %v3088 = vld [vmem:[#allocation6 + $0x3e8] sm:$0xff]
    %v3089 = vld [vmem:[#allocation6 + $0x3f0] sm:$0xff]
    %v3090 = vld [vmem:[#allocation6 + $0x3f8] sm:$0xff]
    %v3091 = vld [vmem:[#allocation6 + $0x400] sm:$0xff]
    %v3092 = vld [vmem:[#allocation6 + $0x408] sm:$0xff]
    %v3093 = vld [vmem:[#allocation6 + $0x410] sm:$0xff]
    %v3094 = vld [vmem:[#allocation6 + $0x418] sm:$0xff]
    %v3095 = vld [vmem:[#allocation6 + $0x420] sm:$0xff]
    %v3096 = vld [vmem:[#allocation6 + $0x428] sm:$0xff]
    %v3097 = vld [vmem:[#allocation6 + $0x430] sm:$0xff]
    %v3098 = vld [vmem:[#allocation6 + $0x438] sm:$0xff]
    %s3099 = scalar_lea.vmem %s3, 5
    %v3100 = vld [vmem:[%s3099] ss:$8 sm:$0x3]
    %v3102 = vperm.slane %v3100, 0
    %v3103 = vperm.slane %v3100, 1
    %v3138 = vunpack.c.l.b16 %v3067
    %v3139 = vunpack.c.h.b16 %v3067
    %v3140 = vunpack.c.l.b16 %v3068
    %v3141 = vunpack.c.h.b16 %v3068
    %v3142 = vunpack.c.l.b16 %v3069
    %v3143 = vunpack.c.h.b16 %v3069
    %v3144 = vunpack.c.l.b16 %v3070
    %v3145 = vunpack.c.h.b16 %v3070
    %v3146 = vunpack.c.l.b16 %v3071
    %v3147 = vunpack.c.h.b16 %v3071
    %v3148 = vunpack.c.l.b16 %v3072
    %v3149 = vunpack.c.h.b16 %v3072
    %v3150 = vunpack.c.l.b16 %v3073
    %v3151 = vunpack.c.h.b16 %v3073
    %v3152 = vunpack.c.l.b16 %v3074
    %v3153 = vunpack.c.h.b16 %v3074
    %v3154 = vunpack.c.l.b16 %v3075
    %v3155 = vunpack.c.h.b16 %v3075
    %v3156 = vunpack.c.l.b16 %v3076
    %v3157 = vunpack.c.h.b16 %v3076
    %v3158 = vunpack.c.l.b16 %v3077
    %v3159 = vunpack.c.h.b16 %v3077
    %v3160 = vunpack.c.l.b16 %v3078
    %v3161 = vunpack.c.h.b16 %v3078
    %v3162 = vunpack.c.l.b16 %v3079
    %v3163 = vunpack.c.h.b16 %v3079
    %v3164 = vunpack.c.l.b16 %v3080
    %v3165 = vunpack.c.h.b16 %v3080
    %v3166 = vunpack.c.l.b16 %v3081
    %v3167 = vunpack.c.h.b16 %v3081
    %v3168 = vunpack.c.l.b16 %v3082
    %v3169 = vunpack.c.h.b16 %v3082
    %v3170 = vunpack.c.l.b16 %v3083
    %v3171 = vunpack.c.h.b16 %v3083
    %v3172 = vunpack.c.l.b16 %v3084
    %v3173 = vunpack.c.h.b16 %v3084
    %v3174 = vunpack.c.l.b16 %v3085
    %v3175 = vunpack.c.h.b16 %v3085
    %v3176 = vunpack.c.l.b16 %v3086
    %v3177 = vunpack.c.h.b16 %v3086
    %v3178 = vunpack.c.l.b16 %v3087
    %v3179 = vunpack.c.h.b16 %v3087
    %v3180 = vunpack.c.l.b16 %v3088
    %v3181 = vunpack.c.h.b16 %v3088
    %v3182 = vunpack.c.l.b16 %v3089
    %v3183 = vunpack.c.h.b16 %v3089
    %v3184 = vunpack.c.l.b16 %v3090
    %v3185 = vunpack.c.h.b16 %v3090
    %v3186 = vunpack.c.l.b16 %v3091
    %v3187 = vunpack.c.h.b16 %v3091
    %v3188 = vunpack.c.l.b16 %v3092
    %v3189 = vunpack.c.h.b16 %v3092
    %v3190 = vunpack.c.l.b16 %v3093
    %v3191 = vunpack.c.h.b16 %v3093
    %v3192 = vunpack.c.l.b16 %v3094
    %v3193 = vunpack.c.h.b16 %v3094
    %v3194 = vunpack.c.l.b16 %v3095
    %v3195 = vunpack.c.h.b16 %v3095
    %v3196 = vunpack.c.l.b16 %v3096
    %v3197 = vunpack.c.h.b16 %v3096
    %v3198 = vunpack.c.l.b16 %v3097
    %v3199 = vunpack.c.h.b16 %v3097
    %v3200 = vunpack.c.l.b16 %v3098
    %v3201 = vunpack.c.h.b16 %v3098
    %v3202 = vpack.c.b16 %v3140, %v3138
    %v3203 = vpack.c.b16 %v3141, %v3139
    %v3204 = vpack.c.b16 %v3144, %v3142
    %v3205 = vpack.c.b16 %v3145, %v3143
    %v3206 = vpack.c.b16 %v3148, %v3146
    %v3207 = vpack.c.b16 %v3149, %v3147
    %v3208 = vpack.c.b16 %v3152, %v3150
    %v3209 = vpack.c.b16 %v3153, %v3151
    %v3210 = vpack.c.b16 %v3156, %v3154
    %v3211 = vpack.c.b16 %v3157, %v3155
    %v3212 = vpack.c.b16 %v3160, %v3158
    %v3213 = vpack.c.b16 %v3161, %v3159
    %v3214 = vpack.c.b16 %v3164, %v3162
    %v3215 = vpack.c.b16 %v3165, %v3163
    %v3216 = vpack.c.b16 %v3168, %v3166
    %v3217 = vpack.c.b16 %v3169, %v3167
    %v3218 = vpack.c.b16 %v3172, %v3170
    %v3219 = vpack.c.b16 %v3173, %v3171
    %v3220 = vpack.c.b16 %v3176, %v3174
    %v3221 = vpack.c.b16 %v3177, %v3175
    %v3222 = vpack.c.b16 %v3180, %v3178
    %v3223 = vpack.c.b16 %v3181, %v3179
    %v3224 = vpack.c.b16 %v3184, %v3182
    %v3225 = vpack.c.b16 %v3185, %v3183
    %v3226 = vpack.c.b16 %v3188, %v3186
    %v3227 = vpack.c.b16 %v3189, %v3187
    %v3228 = vpack.c.b16 %v3192, %v3190
    %v3229 = vpack.c.b16 %v3193, %v3191
    %v3230 = vpack.c.b16 %v3196, %v3194
    %v3231 = vpack.c.b16 %v3197, %v3195
    %v3232 = vpack.c.b16 %v3200, %v3198
    %v3233 = vpack.c.b16 %v3201, %v3199
    %3266 = vmatpush.bf16.msra.mxu0 %v3216
    %3267 = vmatpush.bf16.msra.mxu0 %v3214
    %3268 = vmatpush.bf16.msra.mxu0 %v3212
    %3269 = vmatpush.bf16.msra.mxu0 %v3210
    %3270 = vmatpush.bf16.msra.mxu0 %v3208
    %3271 = vmatpush.bf16.msra.mxu0 %v3206
    %3272 = vmatpush.bf16.msra.mxu0 %v3204
    %3273 = vmatpush.bf16.msra.mxu0 %v3202
    %3274 = vmatmul.bf16.gmra.mxu0 %v3065
    %v3275 = vpop.f32.mrf.mxu0
    %v3276 = vadd.f32 %v3102, %v3275
    %v3277 = vpop.f32.mrf.mxu0
    %3278 = vdwg.mxu0
    %3279 = vmatpush.bf16.msra.mxu0 %v3232
    %3280 = vmatpush.bf16.msra.mxu0 %v3230
    %3281 = vmatpush.bf16.msra.mxu0 %v3228
    %3282 = vmatpush.bf16.msra.mxu0 %v3226
    %3283 = vmatpush.bf16.msra.mxu0 %v3224
    %3284 = vmatpush.bf16.msra.mxu0 %v3222
    %3285 = vmatpush.bf16.msra.mxu0 %v3220
    %3286 = vmatpush.bf16.msra.mxu0 %v3218
    %3287 = vmatmul.bf16.gmra.mxu0 %v3066
    %v3288 = vpop.f32.mrf.mxu0
    %v3289 = vadd.f32 %v3276, %v3288
    %v3290 = vpop.f32.mrf.mxu0
    %3291 = vdwg.mxu0
    %3292 = vmatpush.bf16.msra.mxu0 %v3217
    %3293 = vmatpush.bf16.msra.mxu0 %v3215
    %3294 = vmatpush.bf16.msra.mxu0 %v3213
    %3295 = vmatpush.bf16.msra.mxu0 %v3211
    %3296 = vmatpush.bf16.msra.mxu0 %v3209
    %3297 = vmatpush.bf16.msra.mxu0 %v3207
    %3298 = vmatpush.bf16.msra.mxu0 %v3205
    %3299 = vmatpush.bf16.msra.mxu0 %v3203
    %3300 = vmatmul.bf16.gmra.mxu0 %v3065
    %v3301 = vpop.f32.mrf.mxu0
    %v3302 = vadd.f32 %v3103, %v3301
    %v3303 = vpop.f32.mrf.mxu0
    %3304 = vdwg.mxu0
    %3305 = vmatpush.bf16.msra.mxu0 %v3233
    %3306 = vmatpush.bf16.msra.mxu0 %v3231
    %3307 = vmatpush.bf16.msra.mxu0 %v3229
    %3308 = vmatpush.bf16.msra.mxu0 %v3227
    %3309 = vmatpush.bf16.msra.mxu0 %v3225
    %3310 = vmatpush.bf16.msra.mxu0 %v3223
    %3311 = vmatpush.bf16.msra.mxu0 %v3221
    %3312 = vmatpush.bf16.msra.mxu0 %v3219
    %3313 = vmatmul.bf16.gmra.mxu0 %v3066
    %v3314 = vpop.f32.mrf.mxu0
    %v3315 = vadd.f32 %v3302, %v3314
    %v3316 = vpop.f32.mrf.mxu0
    %3317 = vdwg.mxu0
    %v3320 = vrot.slane %v3315, 6
    %vm3321 = vcmask 1041408
    %v3322 = vsel %vm3321, %v3289, %v3320
    %3324 = vst [vmem:[%s4] sm:$0xf] %v3322
    %v3327 = vrot.slane %v2805, 6
    %v3328 = vsel %vm3321, %v2701, %v3327
    %3330 = vst [vmem:[%s4 + $0x4] sm:$0xf] %v3328
    // Predicated region
    $region26: #{rnd_minigrid_forward.1} parent=1 // pred_check
      _
    $region27: #{rnd_minigrid_forward.1} parent=1 // pred_check_branch
      %3332 = sbr.rel (0) target = $region29
    $region28: #{rnd_minigrid_forward.1} parent=1 // pred_region
      _
    $region29: #{rnd_minigrid_forward.1} parent=1 // pred_fallthru
      _
    // Predicated region
    $region30: #{rnd_minigrid_forward.1} parent=1 // pred_check
      _
    $region31: #{rnd_minigrid_forward.1} parent=1 // pred_check_branch
      %3334 = sbr.rel (0) target = $region33
    $region32: #{rnd_minigrid_forward.1} parent=1 // pred_region
      _
    $region33: #{rnd_minigrid_forward.1} parent=1 // pred_fallthru
      _
    %3335 = vsyncpa [#allocation7], 1
    %3336 = vsyncpa [#allocation9], 1

</llo_original>
